<compile_context>
chip_gen: v6e
topology: v6e:2x2x1
jax: 0.10.0
libtpu: 0.0.40
codegen_flags: <defaults>
</compile_context>

<pallas_src>
import jax
import jax.numpy as jnp
from jax.experimental import pallas as pl
from jax.experimental.pallas import tpu as pltpu


def _round_up(n, m):
    return ((n + m - 1) // m) * m


def _cdiv(a, b):
    return (a + b - 1) // b


def _tpu_config():
    """Best-effort TPU-generation detection; conservative defaults on failure."""
    kind = ""
    try:
        kind = jax.devices()[0].device_kind.lower()
    except Exception:
        pass
    gen = 6
    for g in (7, 6, 5, 4):
        if "v%d" % g in kind:
            gen = g
            break
    two_tc = (gen >= 7) or (gen == 4) or ("v5p" in kind)   # dual-TC / megacore parts
    bf16_epilogue = gen >= 6                               # bf16 VPU/EUP on v6e+
    tm_cap = 256 if gen >= 7 else 512                      # 64 MiB VMEM on v7x
    vmem_cap = (64 << 20) if gen >= 7 else (100 << 20)
    return dict(gen=gen, two_tc=two_tc, bf16_epilogue=bf16_epilogue,
                tm_cap=tm_cap, vmem_cap=vmem_cap)


def _batch_tiling(B, *, two_tc, tm_cap):
    """Pick (padded_batch, batch_tile).

    Single-TC chips: one big tile (the grid is a serial loop; splitting only
    adds per-step overhead and shrinks the MXU M dimension).
    Dual-TC chips: an even number of grid steps >= 2 so both TensorCores get
    equal work under "parallel" dimension semantics.
    """
    Bp = _round_up(B, 8)
    if two_tc and Bp >= 16:
        steps = 2 * _cdiv(Bp, 2 * tm_cap)       # even, >= 2
    else:
        steps = _cdiv(Bp, tm_cap)               # usually 1 for inference batches
    tm = _round_up(_cdiv(Bp, steps), 8)
    return steps * tm, tm


# ---------------------------------------------------------------------------
# Kernel
# ---------------------------------------------------------------------------
def make_mlp_kernel(bf16_epilogue):
    def swish_nodiv(z, sp):
        # Swish WITHOUT the /1.1 (that scale is folded into the next layer's
        # weights at pack time); returns bf16 ready for the next MXU matmul.
        if bf16_epilogue:
            zb = z.astype(jnp.bfloat16)
            return zb * jax.nn.sigmoid(zb * sp.astype(jnp.bfloat16))
        return (z * jax.nn.sigmoid(z * sp)).astype(jnp.bfloat16)

    def kernel(x_ref, w1_ref, b1_ref, w2_ref, b2_ref, w3_ref, b3_ref,
               sp_ref, o_ref):
        sp1 = sp_ref[0]   # softplus(beta1), precomputed in the wrapper (SMEM)
        sp2 = sp_ref[1]   # softplus(beta2)

        # Layer 1: Linear + Swish (bf16 operands, f32 MXU accumulation)
        z1 = jnp.dot(x_ref[...], w1_ref[...],
                     preferred_element_type=jnp.float32) + b1_ref[...]
        a1 = swish_nodiv(z1, sp1)

        # Layer 2: Linear + Swish  (Dropout p=0.0 -> identity)
        z2 = jnp.dot(a1, w2_ref[...],
                     preferred_element_type=jnp.float32) + b2_ref[...]
        a2 = swish_nodiv(z2, sp2)

        # Projection
        out = jnp.dot(a2, w3_ref[...],
                      preferred_element_type=jnp.float32) + b3_ref[...]
        o_ref[...] = out.astype(o_ref.dtype)

    return kernel


# ---------------------------------------------------------------------------
# Wrapper
# ---------------------------------------------------------------------------
def pack_params(params):
    """Zero-pad feature dims to multiples of 128 (lane-dense output stores and
    MXU-friendly K/N; exact since swish(0)=0), cast weights to bf16 for the
    MXU, fold the 1/1.1 swish scale into W2/W3, and hoist softplus(beta)."""
    w1, b1 = params["w1"], params["b1"]
    w2, b2 = params["w2"], params["b2"]
    w3, b3 = params["w3"], params["b3"]
    D_in, H = w1.shape
    D_out = w3.shape[1]
    Dp_in, Hp, Dp_out = (_round_up(D_in, 128), _round_up(H, 128),
                         _round_up(D_out, 128))

    def pad2(a, r, c):
        return jnp.pad(a, ((0, r - a.shape[0]), (0, c - a.shape[1])))

    sp = jax.nn.softplus(
        jnp.concatenate([params["beta1"], params["beta2"]])).astype(jnp.float32)
    inv = 1.0 / 1.1   # swish(z)/1.1 @ W  ==  swish_nodiv(z) @ (W/1.1)

    return {
        "w1": pad2(w1, Dp_in, Hp).astype(jnp.bfloat16),
        "b1": pad2(b1, 1, Hp).astype(jnp.float32),
        "w2": pad2(w2 * inv, Hp, Hp).astype(jnp.bfloat16),
        "b2": pad2(b2, 1, Hp).astype(jnp.float32),
        "w3": pad2(w3 * inv, Hp, Dp_out).astype(jnp.bfloat16),
        "b3": pad2(b3, 1, Dp_out).astype(jnp.float32),
        "sp": sp,
        "dims": (D_in, H, D_out, Dp_in, Hp, Dp_out),
    }


def mlp_forward(x, packed, out_dtype=jnp.float32):
    """x: [B, input_dim] float32. packed: output of pack_params()."""
    B, D_in = x.shape
    D_in0, H, D_out, Dp_in, Hp, Dp_out = packed["dims"]
    assert D_in == D_in0

    cfg = _tpu_config()

    # Bound the f32 intermediates (tm x Hp) so the activation working set stays
    # comfortably inside VMEM even for large hidden sizes.
    widest = max(Dp_in, Hp, Dp_out)
    tm_cap = max(64, min(cfg["tm_cap"], ((16 << 20) // (4 * widest)) // 8 * 8))
    Bp, tm = _batch_tiling(B, two_tc=cfg["two_tc"], tm_cap=tm_cap)

    xp = x
    if (Bp, Dp_in) != (B, D_in):
        xp = jnp.pad(x, ((0, Bp - B), (0, Dp_in - D_in)))
    xp = xp.astype(jnp.bfloat16)

    grid = (Bp // tm,)
    full = lambda i: (0, 0)
    out_itemsize = jnp.dtype(out_dtype).itemsize

    weight_bytes = ((Dp_in * Hp + Hp * Hp + Hp * Dp_out) * 2
                    + (Hp + Hp + Dp_out) * 4)
    io_bytes = 2 * tm * Dp_in * 2 + 2 * tm * Dp_out * out_itemsize   # 2x-buffered x / out tiles
    act_bytes = 4 * tm * widest * 4                                  # f32 intermediates (rough)

    cost = pl.CostEstimate(
        flops=2 * Bp * (Dp_in * Hp + Hp * Hp + Hp * Dp_out),
        transcendentals=2 * Bp * Hp,
        # Weights counted once: constant index_map -> fetched a single time.
        # (Must be revisited if the hidden-dim tiling TODO is implemented.)
        bytes_accessed=(Bp * Dp_in * 2 + weight_bytes + Bp * Dp_out * out_itemsize),
    )

    def build(single_buffer_weights):
        def wspec(shape):
            if single_buffer_weights:
                # Constant index_map -> block is never re-fetched across the
                # grid; one VMEM buffer suffices (halves weight VMEM).
                return pl.BlockSpec(shape, full, pipeline_mode=pl.Buffered(1))
            return pl.BlockSpec(shape, full)

        need = (weight_bytes * (1 if single_buffer_weights else 2)
                + io_bytes + act_bytes)
        vmem_limit = int(min(cfg["vmem_cap"], max(32 << 20, 2 * need)))

        return pl.pallas_call(
            make_mlp_kernel(cfg["bf16_epilogue"]),
            out_shape=jax.ShapeDtypeStruct((Bp, Dp_out), out_dtype),
            grid_spec=pltpu.PrefetchScalarGridSpec(
                num_scalar_prefetch=0,
                grid=grid,
                in_specs=[
                    pl.BlockSpec((tm, Dp_in), lambda i: (i, 0)),   # x tile (bf16)
                    wspec((Dp_in, Hp)),                            # W1 (bf16, resident)
                    wspec((1, Hp)),                                # b1 (f32)
                    wspec((Hp, Hp)),                               # W2 (bf16, /1.1 folded)
                    wspec((1, Hp)),                                # b2 (f32)
                    wspec((Hp, Dp_out)),                           # W3 (bf16, /1.1 folded)
                    wspec((1, Dp_out)),                            # b3 (f32)
                    pl.BlockSpec(memory_space=pltpu.SMEM),         # softplus(betas)
                ],
                out_specs=pl.BlockSpec((tm, Dp_out), lambda i: (i, 0)),
            ),
            compiler_params=pltpu.CompilerParams(
                dimension_semantics=("parallel",),
                vmem_limit_bytes=vmem_limit),
            cost_estimate=cost,
        )

    args = (xp, packed["w1"], packed["b1"], packed["w2"], packed["b2"],
            packed["w3"], packed["b3"], packed["sp"])
    try:
        out = build(single_buffer_weights=True)(*args)
    except Exception:
        # Older jax without pipeline_mode=pl.Buffered support: fall back to the
        # default double-buffered weight blocks (correct, just uses more VMEM).
        out = build(single_buffer_weights=False)(*args)

    return out[:B, :D_out]


# ---------------------------------------------------------------------------
# Init + reference (pure JAX, f32)
# ---------------------------------------------------------------------------
def init_params(key, input_dim, hidden_dim, output_dim):
    """Mimics torch.nn.Linear default init (uniform +-1/sqrt(fan_in))."""
    ks = jax.random.split(key, 6)

    def linear(kw, kb, fan_in, fan_out):
        bound = 1.0 / jnp.sqrt(fan_in)
        w = jax.random.uniform(kw, (fan_in, fan_out), jnp.float32, -bound, bound)
        b = jax.random.uniform(kb, (1, fan_out), jnp.float32, -bound, bound)
        return w, b

    w1, b1 = linear(ks[0], ks[1], input_dim, hidden_dim)
    w2, b2 = linear(ks[2], ks[3], hidden_dim, hidden_dim)
    w3, b3 = linear(ks[4], ks[5], hidden_dim, output_dim)
    return {
        "w1": w1, "b1": b1,
        "w2": w2, "b2": b2,
        "w3": w3, "b3": b3,
        "beta1": jnp.array([0.5], jnp.float32),   # Swish().beta init
        "beta2": jnp.array([0.5], jnp.float32),
    }


def mlp_reference(x, p):
    def swish(z, beta):
        sp = jax.nn.softplus(beta)
        return (z * jax.nn.sigmoid(z * sp)) / 1.1
    a1 = swish(x @ p["w1"] + p["b1"], p["beta1"][0])
    a2 = swish(a1 @ p["w2"] + p["b2"], p["beta2"][0])
    return a2 @ p["w3"] + p["b3"]


if __name__ == "__main__":
    input_dim = hidden_dim = output_dim = 64   # module defaults
    batch = 128

    key = jax.random.PRNGKey(0)
    kx, kp = jax.random.split(key)
    x = jax.random.normal(kx, (batch, input_dim), jnp.float32)
    params = init_params(kp, input_dim, hidden_dim, output_dim)
    packed = pack_params(params)

    out = mlp_forward(x, packed)
    out = jax.block_until_ready(out)

    ref = mlp_reference(x, params)
    assert out.shape == (batch, output_dim)
    # bf16 MXU inputs / bf16 epilogue with f32 accumulation -> ~1e-3 abs error
    assert jnp.allclose(out, ref, atol=2e-2, rtol=2e-2), "mismatch vs JAX reference"

    print("KERNEL_OK")
</pallas_src>

<mosaic_0001>
module attributes {stable_mosaic.version = 11 : i64} {
  func.func @kernel(%arg0: i32, %arg1: memref<128x128xbf16, #tpu.memory_space<vmem>>, %arg2: memref<128x128xbf16, #tpu.memory_space<vmem>>, %arg3: memref<1x128xf32, #tpu.memory_space<vmem>>, %arg4: memref<128x128xbf16, #tpu.memory_space<vmem>>, %arg5: memref<1x128xf32, #tpu.memory_space<vmem>>, %arg6: memref<128x128xbf16, #tpu.memory_space<vmem>>, %arg7: memref<1x128xf32, #tpu.memory_space<vmem>>, %arg8: memref<2xf32, #tpu.memory_space<smem>>, %arg9: memref<128x128xf32, #tpu.memory_space<vmem>>) attributes {dimension_semantics = [#tpu.dimension_semantics<parallel>], iteration_bounds = array<i64: 1>, scalar_prefetch = 0 : i64, scratch_operands = 0 : i64, tpu.core_type = #tpu.core_type<tc>, window_params = [{transform_indices = @transform_0, window_bounds = array<i64: 128, 128>}, {pipeline_mode = #tpu.pipeline_mode<synchronous>, transform_indices = @transform_1, window_bounds = array<i64: 128, 128>}, {pipeline_mode = #tpu.pipeline_mode<synchronous>, transform_indices = @transform_2, window_bounds = array<i64: 1, 128>}, {pipeline_mode = #tpu.pipeline_mode<synchronous>, transform_indices = @transform_3, window_bounds = array<i64: 128, 128>}, {pipeline_mode = #tpu.pipeline_mode<synchronous>, transform_indices = @transform_4, window_bounds = array<i64: 1, 128>}, {pipeline_mode = #tpu.pipeline_mode<synchronous>, transform_indices = @transform_5, window_bounds = array<i64: 128, 128>}, {pipeline_mode = #tpu.pipeline_mode<synchronous>, transform_indices = @transform_6, window_bounds = array<i64: 1, 128>}, {transform_indices = @transform_7, window_bounds = array<i64: 2>}, {transform_indices = @transform_8, window_bounds = array<i64: 128, 128>}]} {
    %c0 = arith.constant 0 : index
    %0 = memref.load %arg8[%c0] : memref<2xf32, #tpu.memory_space<smem>>
    %c1 = arith.constant 1 : index
    %1 = memref.load %arg8[%c1] : memref<2xf32, #tpu.memory_space<smem>>
    %c0_0 = arith.constant 0 : index
    %c0_1 = arith.constant 0 : index
    %2 = vector.load %arg1[%c0_0, %c0_1] : memref<128x128xbf16, #tpu.memory_space<vmem>>, vector<128x128xbf16>
    %c0_2 = arith.constant 0 : index
    %c0_3 = arith.constant 0 : index
    %3 = vector.load %arg2[%c0_2, %c0_3] : memref<128x128xbf16, #tpu.memory_space<vmem>>, vector<128x128xbf16>
    %cst = arith.constant dense<0.000000e+00> : vector<128x128xf32>
    %4 = tpu.matmul %2, %3, %cst {dimension_numbers = #tpu.dot_dimension_numbers<[1], [0], [0], [1], [0, 0, 1, 1], [], []>} : vector<128x128xbf16>, vector<128x128xbf16>, vector<128x128xf32> -> vector<128x128xf32>
    %c0_4 = arith.constant 0 : index
    %c0_5 = arith.constant 0 : index
    %5 = vector.load %arg3[%c0_4, %c0_5] : memref<1x128xf32, #tpu.memory_space<vmem>>, vector<1x128xf32>
    %6 = vector.broadcast %5 : vector<1x128xf32> to vector<128x128xf32>
    %7 = arith.addf %4, %6 : vector<128x128xf32>
    %8 = arith.truncf %7 : vector<128x128xf32> to vector<128x128xbf16>
    %9 = arith.truncf %0 : f32 to bf16
    %10 = vector.broadcast %9 : bf16 to vector<128x128xbf16>
    %11 = arith.mulf %8, %10 : vector<128x128xbf16>
    %12 = arith.negf %11 : vector<128x128xbf16>
    %13 = math.exp %12 : vector<128x128xbf16>
    %cst_6 = arith.constant 1.000000e+00 : bf16
    %14 = vector.broadcast %cst_6 : bf16 to vector<128x128xbf16>
    %15 = arith.addf %14, %13 : vector<128x128xbf16>
    %16 = arith.divf %14, %15 : vector<128x128xbf16>
    %17 = arith.mulf %8, %16 : vector<128x128xbf16>
    %c0_7 = arith.constant 0 : index
    %c0_8 = arith.constant 0 : index
    %18 = vector.load %arg4[%c0_7, %c0_8] : memref<128x128xbf16, #tpu.memory_space<vmem>>, vector<128x128xbf16>
    %cst_9 = arith.constant dense<0.000000e+00> : vector<128x128xf32>
    %19 = tpu.matmul %17, %18, %cst_9 {dimension_numbers = #tpu.dot_dimension_numbers<[1], [0], [0], [1], [0, 0, 1, 1], [], []>} : vector<128x128xbf16>, vector<128x128xbf16>, vector<128x128xf32> -> vector<128x128xf32>
    %c0_10 = arith.constant 0 : index
    %c0_11 = arith.constant 0 : index
    %20 = vector.load %arg5[%c0_10, %c0_11] : memref<1x128xf32, #tpu.memory_space<vmem>>, vector<1x128xf32>
    %21 = vector.broadcast %20 : vector<1x128xf32> to vector<128x128xf32>
    %22 = arith.addf %19, %21 : vector<128x128xf32>
    %23 = arith.truncf %22 : vector<128x128xf32> to vector<128x128xbf16>
    %24 = arith.truncf %1 : f32 to bf16
    %25 = vector.broadcast %24 : bf16 to vector<128x128xbf16>
    %26 = arith.mulf %23, %25 : vector<128x128xbf16>
    %27 = arith.negf %26 : vector<128x128xbf16>
    %28 = math.exp %27 : vector<128x128xbf16>
    %cst_12 = arith.constant 1.000000e+00 : bf16
    %29 = vector.broadcast %cst_12 : bf16 to vector<128x128xbf16>
    %30 = arith.addf %29, %28 : vector<128x128xbf16>
    %31 = arith.divf %29, %30 : vector<128x128xbf16>
    %32 = arith.mulf %23, %31 : vector<128x128xbf16>
    %c0_13 = arith.constant 0 : index
    %c0_14 = arith.constant 0 : index
    %33 = vector.load %arg6[%c0_13, %c0_14] : memref<128x128xbf16, #tpu.memory_space<vmem>>, vector<128x128xbf16>
    %cst_15 = arith.constant dense<0.000000e+00> : vector<128x128xf32>
    %34 = tpu.matmul %32, %33, %cst_15 {dimension_numbers = #tpu.dot_dimension_numbers<[1], [0], [0], [1], [0, 0, 1, 1], [], []>} : vector<128x128xbf16>, vector<128x128xbf16>, vector<128x128xf32> -> vector<128x128xf32>
    %c0_16 = arith.constant 0 : index
    %c0_17 = arith.constant 0 : index
    %35 = vector.load %arg7[%c0_16, %c0_17] : memref<1x128xf32, #tpu.memory_space<vmem>>, vector<1x128xf32>
    %36 = vector.broadcast %35 : vector<1x128xf32> to vector<128x128xf32>
    %37 = arith.addf %34, %36 : vector<128x128xf32>
    %c0_18 = arith.constant 0 : index
    %c0_19 = arith.constant 0 : index
    %38 = vector.load %arg9[%c0_18, %c0_19] : memref<128x128xf32, #tpu.memory_space<vmem>>, vector<128x128xf32>
    tpu.vector_store %arg9[%c0_18, %c0_19], %37 {strides = array<i32>} : memref<128x128xf32, #tpu.memory_space<vmem>>, vector<128x128xf32>,
    return
  }
  func.func @transform_0(%arg0: i32) -> (i32, i32) {
    %c0_i32 = arith.constant 0 : i32
    %c0_i32_0 = arith.constant 0 : i32
    return %arg0, %c0_i32 : i32, i32
  }
  func.func @transform_1(%arg0: i32) -> (i32, i32) {
    %c0_i32 = arith.constant 0 : i32
    %c0_i32_0 = arith.constant 0 : i32
    %c0_i32_1 = arith.constant 0 : i32
    return %c0_i32, %c0_i32_0 : i32, i32
  }
  func.func @transform_2(%arg0: i32) -> (i32, i32) {
    %c0_i32 = arith.constant 0 : i32
    %c0_i32_0 = arith.constant 0 : i32
    %c0_i32_1 = arith.constant 0 : i32
    return %c0_i32, %c0_i32_0 : i32, i32
  }
  func.func @transform_3(%arg0: i32) -> (i32, i32) {
    %c0_i32 = arith.constant 0 : i32
    %c0_i32_0 = arith.constant 0 : i32
    %c0_i32_1 = arith.constant 0 : i32
    return %c0_i32, %c0_i32_0 : i32, i32
  }
  func.func @transform_4(%arg0: i32) -> (i32, i32) {
    %c0_i32 = arith.constant 0 : i32
    %c0_i32_0 = arith.constant 0 : i32
    %c0_i32_1 = arith.constant 0 : i32
    return %c0_i32, %c0_i32_0 : i32, i32
  }
  func.func @transform_5(%arg0: i32) -> (i32, i32) {
    %c0_i32 = arith.constant 0 : i32
    %c0_i32_0 = arith.constant 0 : i32
    %c0_i32_1 = arith.constant 0 : i32
    return %c0_i32, %c0_i32_0 : i32, i32
  }
  func.func @transform_6(%arg0: i32) -> (i32, i32) {
    %c0_i32 = arith.constant 0 : i32
    %c0_i32_0 = arith.constant 0 : i32
    %c0_i32_1 = arith.constant 0 : i32
    return %c0_i32, %c0_i32_0 : i32, i32
  }
  func.func @transform_7(%arg0: i32) -> i32 {
    %c0_i32 = arith.constant 0 : i32
    %c0_i32_0 = arith.constant 0 : i32
    return %c0_i32 : i32
  }
  func.func @transform_8(%arg0: i32) -> (i32, i32) {
    %c0_i32 = arith.constant 0 : i32
    %c0_i32_0 = arith.constant 0 : i32
    return %arg0, %c0_i32 : i32, i32
  }
}

module attributes {stable_mosaic.version = 11 : i64} {
  func.func @kernel(%arg0: i32, %arg1: memref<128x128xbf16, #tpu.memory_space<vmem>>, %arg2: memref<128x128xbf16, #tpu.memory_space<vmem>>, %arg3: memref<1x128xf32, #tpu.memory_space<vmem>>, %arg4: memref<128x128xbf16, #tpu.memory_space<vmem>>, %arg5: memref<1x128xf32, #tpu.memory_space<vmem>>, %arg6: memref<128x128xbf16, #tpu.memory_space<vmem>>, %arg7: memref<1x128xf32, #tpu.memory_space<vmem>>, %arg8: memref<2xf32, #tpu.memory_space<smem>>, %arg9: memref<128x128xf32, #tpu.memory_space<vmem>>) attributes {dimension_semantics = [#tpu.dimension_semantics<parallel>], iteration_bounds = array<i64: 1>, scalar_prefetch = 0 : i64, scratch_operands = 0 : i64, tpu.core_type = #tpu.core_type<tc>, window_params = [{transform_indices = @transform_0, window_bounds = array<i64: 128, 128>}, {pipeline_mode = #tpu.pipeline_mode<synchronous>, transform_indices = @transform_1, window_bounds = array<i64: 128, 128>}, {pipeline_mode = #tpu.pipeline_mode<synchronous>, transform_indices = @transform_2, window_bounds = array<i64: 1, 128>}, {pipeline_mode = #tpu.pipeline_mode<synchronous>, transform_indices = @transform_3, window_bounds = array<i64: 128, 128>}, {pipeline_mode = #tpu.pipeline_mode<synchronous>, transform_indices = @transform_4, window_bounds = array<i64: 1, 128>}, {pipeline_mode = #tpu.pipeline_mode<synchronous>, transform_indices = @transform_5, window_bounds = array<i64: 128, 128>}, {pipeline_mode = #tpu.pipeline_mode<synchronous>, transform_indices = @transform_6, window_bounds = array<i64: 1, 128>}, {transform_indices = @transform_7, window_bounds = array<i64: 2>}, {transform_indices = @transform_8, window_bounds = array<i64: 128, 128>}]} {
    %c0 = arith.constant 0 : index
    %0 = memref.load %arg8[%c0] : memref<2xf32, #tpu.memory_space<smem>>
    %c1 = arith.constant 1 : index
    %1 = memref.load %arg8[%c1] : memref<2xf32, #tpu.memory_space<smem>>
    %c0_0 = arith.constant 0 : index
    %c0_1 = arith.constant 0 : index
    %2 = vector.load %arg1[%c0_0, %c0_1] : memref<128x128xbf16, #tpu.memory_space<vmem>>, vector<128x128xbf16>
    %c0_2 = arith.constant 0 : index
    %c0_3 = arith.constant 0 : index
    %3 = vector.load %arg2[%c0_2, %c0_3] : memref<128x128xbf16, #tpu.memory_space<vmem>>, vector<128x128xbf16>
    %cst = arith.constant dense<0.000000e+00> : vector<128x128xf32>
    %4 = tpu.matmul %2, %3, %cst {dimension_numbers = #tpu.dot_dimension_numbers<[1], [0], [0], [1], [0, 0, 1, 1], [], []>} : vector<128x128xbf16>, vector<128x128xbf16>, vector<128x128xf32> -> vector<128x128xf32>
    %c0_4 = arith.constant 0 : index
    %c0_5 = arith.constant 0 : index
    %5 = vector.load %arg3[%c0_4, %c0_5] : memref<1x128xf32, #tpu.memory_space<vmem>>, vector<1x128xf32>
    %6 = vector.broadcast %5 : vector<1x128xf32> to vector<128x128xf32>
    %7 = arith.addf %4, %6 : vector<128x128xf32>
    %8 = arith.truncf %7 : vector<128x128xf32> to vector<128x128xbf16>
    %9 = arith.truncf %0 : f32 to bf16
    %10 = vector.broadcast %9 : bf16 to vector<128x128xbf16>
    %11 = arith.mulf %8, %10 : vector<128x128xbf16>
    %12 = arith.negf %11 : vector<128x128xbf16>
    %13 = math.exp %12 : vector<128x128xbf16>
    %cst_6 = arith.constant 1.000000e+00 : bf16
    %14 = vector.broadcast %cst_6 : bf16 to vector<128x128xbf16>
    %15 = arith.addf %14, %13 : vector<128x128xbf16>
    %16 = arith.divf %14, %15 : vector<128x128xbf16>
    %17 = arith.mulf %8, %16 : vector<128x128xbf16>
    %c0_7 = arith.constant 0 : index
    %c0_8 = arith.constant 0 : index
    %18 = vector.load %arg4[%c0_7, %c0_8] : memref<128x128xbf16, #tpu.memory_space<vmem>>, vector<128x128xbf16>
    %cst_9 = arith.constant dense<0.000000e+00> : vector<128x128xf32>
    %19 = tpu.matmul %17, %18, %cst_9 {dimension_numbers = #tpu.dot_dimension_numbers<[1], [0], [0], [1], [0, 0, 1, 1], [], []>} : vector<128x128xbf16>, vector<128x128xbf16>, vector<128x128xf32> -> vector<128x128xf32>
    %c0_10 = arith.constant 0 : index
    %c0_11 = arith.constant 0 : index
    %20 = vector.load %arg5[%c0_10, %c0_11] : memref<1x128xf32, #tpu.memory_space<vmem>>, vector<1x128xf32>
    %21 = vector.broadcast %20 : vector<1x128xf32> to vector<128x128xf32>
    %22 = arith.addf %19, %21 : vector<128x128xf32>
    %23 = arith.truncf %22 : vector<128x128xf32> to vector<128x128xbf16>
    %24 = arith.truncf %1 : f32 to bf16
    %25 = vector.broadcast %24 : bf16 to vector<128x128xbf16>
    %26 = arith.mulf %23, %25 : vector<128x128xbf16>
    %27 = arith.negf %26 : vector<128x128xbf16>
    %28 = math.exp %27 : vector<128x128xbf16>
    %cst_12 = arith.constant 1.000000e+00 : bf16
    %29 = vector.broadcast %cst_12 : bf16 to vector<128x128xbf16>
    %30 = arith.addf %29, %28 : vector<128x128xbf16>
    %31 = arith.divf %29, %30 : vector<128x128xbf16>
    %32 = arith.mulf %23, %31 : vector<128x128xbf16>
    %c0_13 = arith.constant 0 : index
    %c0_14 = arith.constant 0 : index
    %33 = vector.load %arg6[%c0_13, %c0_14] : memref<128x128xbf16, #tpu.memory_space<vmem>>, vector<128x128xbf16>
    %cst_15 = arith.constant dense<0.000000e+00> : vector<128x128xf32>
    %34 = tpu.matmul %32, %33, %cst_15 {dimension_numbers = #tpu.dot_dimension_numbers<[1], [0], [0], [1], [0, 0, 1, 1], [], []>} : vector<128x128xbf16>, vector<128x128xbf16>, vector<128x128xf32> -> vector<128x128xf32>
    %c0_16 = arith.constant 0 : index
    %c0_17 = arith.constant 0 : index
    %35 = vector.load %arg7[%c0_16, %c0_17] : memref<1x128xf32, #tpu.memory_space<vmem>>, vector<1x128xf32>
    %36 = vector.broadcast %35 : vector<1x128xf32> to vector<128x128xf32>
    %37 = arith.addf %34, %36 : vector<128x128xf32>
    %c0_18 = arith.constant 0 : index
    %c0_19 = arith.constant 0 : index
    %38 = vector.load %arg9[%c0_18, %c0_19] : memref<128x128xf32, #tpu.memory_space<vmem>>, vector<128x128xf32>
    tpu.vector_store %arg9[%c0_18, %c0_19], %37 {strides = array<i32>} : memref<128x128xf32, #tpu.memory_space<vmem>>, vector<128x128xf32>,
    return
  }
  func.func @transform_0(%arg0: i32) -> (i32, i32) {
    %c0_i32 = arith.constant 0 : i32
    %c0_i32_0 = arith.constant 0 : i32
    return %arg0, %c0_i32 : i32, i32
  }
  func.func @transform_1(%arg0: i32) -> (i32, i32) {
    %c0_i32 = arith.constant 0 : i32
    %c0_i32_0 = arith.constant 0 : i32
    %c0_i32_1 = arith.constant 0 : i32
    return %c0_i32, %c0_i32_0 : i32, i32
  }
  func.func @transform_2(%arg0: i32) -> (i32, i32) {
    %c0_i32 = arith.constant 0 : i32
    %c0_i32_0 = arith.constant 0 : i32
    %c0_i32_1 = arith.constant 0 : i32
    return %c0_i32, %c0_i32_0 : i32, i32
  }
  func.func @transform_3(%arg0: i32) -> (i32, i32) {
    %c0_i32 = arith.constant 0 : i32
    %c0_i32_0 = arith.constant 0 : i32
    %c0_i32_1 = arith.constant 0 : i32
    return %c0_i32, %c0_i32_0 : i32, i32
  }
  func.func @transform_4(%arg0: i32) -> (i32, i32) {
    %c0_i32 = arith.constant 0 : i32
    %c0_i32_0 = arith.constant 0 : i32
    %c0_i32_1 = arith.constant 0 : i32
    return %c0_i32, %c0_i32_0 : i32, i32
  }
  func.func @transform_5(%arg0: i32) -> (i32, i32) {
    %c0_i32 = arith.constant 0 : i32
    %c0_i32_0 = arith.constant 0 : i32
    %c0_i32_1 = arith.constant 0 : i32
    return %c0_i32, %c0_i32_0 : i32, i32
  }
  func.func @transform_6(%arg0: i32) -> (i32, i32) {
    %c0_i32 = arith.constant 0 : i32
    %c0_i32_0 = arith.constant 0 : i32
    %c0_i32_1 = arith.constant 0 : i32
    return %c0_i32, %c0_i32_0 : i32, i32
  }
  func.func @transform_7(%arg0: i32) -> i32 {
    %c0_i32 = arith.constant 0 : i32
    %c0_i32_0 = arith.constant 0 : i32
    return %c0_i32 : i32
  }
  func.func @transform_8(%arg0: i32) -> (i32, i32) {
    %c0_i32 = arith.constant 0 : i32
    %c0_i32_0 = arith.constant 0 : i32
    return %arg0, %c0_i32 : i32, i32
  }
}

</mosaic_0001>

<llo_original>
// kernel: tpu_custom_call.1
$region0: #{tpu_custom_call.1}
  #allocation0 [shape = 'u32[]', space=smem, size = 0x4, offset = 0x4, fixed_abs, tag = 'smem constant byte address 0x4 - core index']
  #allocation1 [shape = 'u32[144,128]{1,0:T(1,128)}', space=vmem, size = 0x12000, scoped, tag = 'internal scratch']
  %s0 = inlined_call_operand.hbm [shape: bf16[128,128], index: 0, kind: input, shape index: {}]
  %s1 = inlined_call_operand.hbm [shape: bf16[128,128], index: 1, kind: input, shape index: {}]
  %s2 = inlined_call_operand.vmem [shape: f32[1,128], index: 2, kind: input, shape index: {}]
  %s3 = inlined_call_operand.hbm [shape: bf16[128,128], index: 3, kind: input, shape index: {}]
  %s4 = inlined_call_operand.vmem [shape: f32[1,128], index: 4, kind: input, shape index: {}]
  %s5 = inlined_call_operand.hbm [shape: bf16[128,128], index: 5, kind: input, shape index: {}]
  %s6 = inlined_call_operand.vmem [shape: f32[1,128], index: 6, kind: input, shape index: {}]
  %s7 = inlined_call_operand.vmem [shape: f32[2], index: 7, kind: input, shape index: {}]
  %s8 = inlined_call_operand.hbm [shape: f32[128,128], index: 8, kind: output, shape index: {}]
  %s9 = sld [smem:[#allocation0]]
  $region62: #{tpu_custom_call.1} parent=0
    _
  %s11 = ssub.s32 1, %s9
  %s12 = scalar_select 0, %s11, %s9
  $region1: #{tpu_custom_call.1} parent=0
    #allocation2 [shape = 'u8[32768]{0}', space=vmem, size = 0x8000, scoped, tag = 'input window, operand 0, single buffered']
    #allocation3 [shape = 's32[1]{0}', space=sflag, size = 0x4, scoped, tag = 'scoped memory for tpu_custom_call.1']
    #allocation4 [shape = 's32[1]{0}', space=sflag, size = 0x4, scoped, tag = 'scoped memory for tpu_custom_call.1']
    #allocation5 [shape = 's32[1]{0}', space=sflag, size = 0x4, scoped, tag = 'scoped memory for tpu_custom_call.1']
    #allocation6 [shape = 'u8[32768]{0}', space=vmem, size = 0x8000, scoped, tag = 'input window, operand 1, single buffered']
    #allocation7 [shape = 's32[1]{0}', space=sflag, size = 0x4, scoped, tag = 'scoped memory for tpu_custom_call.1']
    #allocation8 [shape = 'u8[32768]{0}', space=vmem, size = 0x8000, scoped, tag = 'input window, operand 3, single buffered']
    #allocation9 [shape = 'u8[32768]{0}', space=vmem, size = 0x8000, scoped, tag = 'input window, operand 5, single buffered']
    #allocation10 [shape = 's32[1]{0}', space=sflag, size = 0x4, scoped, tag = 'scoped memory for tpu_custom_call.1']
    #allocation11 [shape = 'u8[512]{0}', space=smem, size = 0x200, scoped, tag = 'input window, operand 7, single buffered']
    #allocation12 [shape = 'u8[65536]{0}', space=vmem, size = 0x10000, scoped, tag = 'output window, operand 0, single buffered']
    %13 = vsyncpa [#allocation3], 0
    %14 = vsyncpa [#allocation7], 0
    %15 = vsyncpa [#allocation10], 0
    %16 = vsyncpa [#allocation5], 0
    %17 = vsyncpa [#allocation4], 0
    // Predicated region
    $region2: #{tpu_custom_call.1} parent=1 // pred_check
      _
    $region3: #{tpu_custom_call.1} parent=1 // pred_check_branch
      %19 = sbr.rel (0) target = $region5
    $region4: #{tpu_custom_call.1} parent=1 // pred_region
      %s21 = ssub.s32 1024, 1024
      %22 = vsyncadd [#allocation3], %s21
      %s23 = sshll.u32 [#allocation2], 4
      %s24 = int_to_ptr.vmem [resolvable:$true] %s23
      %29 = dma.hbm_to_vmem [thread:$0]  %s0, 1024, %s24, [#allocation3], 64, 64, 4
    $region5: #{tpu_custom_call.1} parent=1 // pred_fallthru
      _
    // Predicated region
    $region6: #{tpu_custom_call.1} parent=1 // pred_check
      _
    $region7: #{tpu_custom_call.1} parent=1 // pred_check_branch
      %31 = sbr.rel (0) target = $region9
    $region8: #{tpu_custom_call.1} parent=1 // pred_region
      %s33 = ssub.s32 1024, 1024
      %34 = vsyncadd [#allocation7], %s33
      %s35 = sshll.u32 [#allocation6], 4
      %s36 = int_to_ptr.vmem [resolvable:$true] %s35
      %41 = dma.hbm_to_vmem [thread:$0]  %s1, 1024, %s36, [#allocation7], 64, 64, 4
    $region9: #{tpu_custom_call.1} parent=1 // pred_fallthru
      _
    // Predicated region
    $region10: #{tpu_custom_call.1} parent=1 // pred_check
      _
    $region11: #{tpu_custom_call.1} parent=1 // pred_check_branch
      %43 = sbr.rel (0) target = $region13
    $region12: #{tpu_custom_call.1} parent=1 // pred_region
      _
    $region13: #{tpu_custom_call.1} parent=1 // pred_fallthru
      _
    // Predicated region
    $region14: #{tpu_custom_call.1} parent=1 // pred_check
      _
    $region15: #{tpu_custom_call.1} parent=1 // pred_check_branch
      %45 = sbr.rel (0) target = $region17
    $region16: #{tpu_custom_call.1} parent=1 // pred_region
      %s47 = ssub.s32 1024, 1024
      %48 = vsyncadd [#allocation7], %s47
      %s49 = sshll.u32 [#allocation8], 4
      %s50 = int_to_ptr.vmem [resolvable:$true] %s49
      %55 = dma.hbm_to_vmem [thread:$0]  %s3, 1024, %s50, [#allocation7], 64, 64, 4
    $region17: #{tpu_custom_call.1} parent=1 // pred_fallthru
      _
    // Predicated region
    $region18: #{tpu_custom_call.1} parent=1 // pred_check
      _
    $region19: #{tpu_custom_call.1} parent=1 // pred_check_branch
      %57 = sbr.rel (0) target = $region21
    $region20: #{tpu_custom_call.1} parent=1 // pred_region
      _
    $region21: #{tpu_custom_call.1} parent=1 // pred_fallthru
      _
    // Predicated region
    $region22: #{tpu_custom_call.1} parent=1 // pred_check
      _
    $region23: #{tpu_custom_call.1} parent=1 // pred_check_branch
      %59 = sbr.rel (0) target = $region25
    $region24: #{tpu_custom_call.1} parent=1 // pred_region
      %s61 = ssub.s32 1024, 1024
      %62 = vsyncadd [#allocation10], %s61
      %s63 = sshll.u32 [#allocation9], 4
      %s64 = int_to_ptr.vmem [resolvable:$true] %s63
      %69 = dma.hbm_to_vmem [thread:$0]  %s5, 1024, %s64, [#allocation10], 64, 64, 4
    $region25: #{tpu_custom_call.1} parent=1 // pred_fallthru
      _
    // Predicated region
    $region26: #{tpu_custom_call.1} parent=1 // pred_check
      _
    $region27: #{tpu_custom_call.1} parent=1 // pred_check_branch
      %71 = sbr.rel (0) target = $region29
    $region28: #{tpu_custom_call.1} parent=1 // pred_region
      _
    $region29: #{tpu_custom_call.1} parent=1 // pred_fallthru
      _
    // Predicated region
    $region30: #{tpu_custom_call.1} parent=1 // pred_check
      _
    $region31: #{tpu_custom_call.1} parent=1 // pred_check_branch
      %73 = sbr.rel (0) target = $region33
    $region32: #{tpu_custom_call.1} parent=1 // pred_region
      %s75 = ssub.s32 16, 16
      %76 = vsyncadd [#allocation5], %s75
      %s78 = sshll.u32 %s7, 4
      %s79 = int_to_ptr.vmem [resolvable:$true] %s78
      %81 = dma.vmem_to_smem %s79, 16, [#allocation11], [#allocation5]
    $region33: #{tpu_custom_call.1} parent=1 // pred_fallthru
      _
    // Predicated region
    $region34: #{tpu_custom_call.1} parent=1 // pred_check
      _
    $region35: #{tpu_custom_call.1} parent=1 // pred_check_branch
      %83 = sbr.rel (0) target = $region37
    $region36: #{tpu_custom_call.1} parent=1 // pred_region
      %84 = dma.done [#allocation3], 1024
    $region37: #{tpu_custom_call.1} parent=1 // pred_fallthru
      _
    // Predicated region
    $region38: #{tpu_custom_call.1} parent=1 // pred_check
      _
    $region39: #{tpu_custom_call.1} parent=1 // pred_check_branch
      %86 = sbr.rel (0) target = $region41
    $region40: #{tpu_custom_call.1} parent=1 // pred_region
      %87 = dma.done [#allocation7], 1024
    $region41: #{tpu_custom_call.1} parent=1 // pred_fallthru
      _
    // Predicated region
    $region42: #{tpu_custom_call.1} parent=1 // pred_check
      _
    $region43: #{tpu_custom_call.1} parent=1 // pred_check_branch
      %89 = sbr.rel (0) target = $region45
    $region44: #{tpu_custom_call.1} parent=1 // pred_region
      %90 = dma.done [#allocation7], 1024
    $region45: #{tpu_custom_call.1} parent=1 // pred_fallthru
      _
    // Predicated region
    $region46: #{tpu_custom_call.1} parent=1 // pred_check
      _
    $region47: #{tpu_custom_call.1} parent=1 // pred_check_branch
      %92 = sbr.rel (0) target = $region49
    $region48: #{tpu_custom_call.1} parent=1 // pred_region
      %93 = dma.done [#allocation10], 1024
    $region49: #{tpu_custom_call.1} parent=1 // pred_fallthru
      _
    // Predicated region
    $region50: #{tpu_custom_call.1} parent=1 // pred_check
      _
    $region51: #{tpu_custom_call.1} parent=1 // pred_check_branch
      %95 = sbr.rel (0) target = $region53
    $region52: #{tpu_custom_call.1} parent=1 // pred_region
      %96 = dma.done [#allocation5], 16
    $region53: #{tpu_custom_call.1} parent=1 // pred_fallthru
      _
    %97 = sfence
    %s100 = sld [smem:[#allocation11]]
    %s101 = sld [smem:[#allocation11 + $0x1]]
    %v102 = vld [vmem:[#allocation2] sm:$0xf]
    %v103 = vld [vmem:[#allocation2 + $0x4] sm:$0xf]
    %v104 = vld [vmem:[#allocation2 + $0x8] sm:$0xf]
    %v105 = vld [vmem:[#allocation2 + $0xc] sm:$0xf]
    %v106 = vld [vmem:[#allocation2 + $0x10] sm:$0xf]
    %v107 = vld [vmem:[#allocation2 + $0x14] sm:$0xf]
    %v108 = vld [vmem:[#allocation2 + $0x18] sm:$0xf]
    %v109 = vld [vmem:[#allocation2 + $0x1c] sm:$0xf]
    %v110 = vld [vmem:[#allocation2 + $0x20] sm:$0xf]
    %v111 = vld [vmem:[#allocation2 + $0x24] sm:$0xf]
    %v112 = vld [vmem:[#allocation2 + $0x28] sm:$0xf]
    %v113 = vld [vmem:[#allocation2 + $0x2c] sm:$0xf]
    %v114 = vld [vmem:[#allocation2 + $0x30] sm:$0xf]
    %v115 = vld [vmem:[#allocation2 + $0x34] sm:$0xf]
    %v116 = vld [vmem:[#allocation2 + $0x38] sm:$0xf]
    %v117 = vld [vmem:[#allocation2 + $0x3c] sm:$0xf]
    %v118 = vld [vmem:[#allocation6] sm:$0xf]
    %v119 = vld [vmem:[#allocation6 + $0x4] sm:$0xf]
    %v120 = vld [vmem:[#allocation6 + $0x8] sm:$0xf]
    %v121 = vld [vmem:[#allocation6 + $0xc] sm:$0xf]
    %v122 = vld [vmem:[#allocation6 + $0x10] sm:$0xf]
    %v123 = vld [vmem:[#allocation6 + $0x14] sm:$0xf]
    %v124 = vld [vmem:[#allocation6 + $0x18] sm:$0xf]
    %v125 = vld [vmem:[#allocation6 + $0x1c] sm:$0xf]
    %v126 = vld [vmem:[#allocation6 + $0x20] sm:$0xf]
    %v127 = vld [vmem:[#allocation6 + $0x24] sm:$0xf]
    %v128 = vld [vmem:[#allocation6 + $0x28] sm:$0xf]
    %v129 = vld [vmem:[#allocation6 + $0x2c] sm:$0xf]
    %v130 = vld [vmem:[#allocation6 + $0x30] sm:$0xf]
    %v131 = vld [vmem:[#allocation6 + $0x34] sm:$0xf]
    %v132 = vld [vmem:[#allocation6 + $0x38] sm:$0xf]
    %v133 = vld [vmem:[#allocation6 + $0x3c] sm:$0xf]
    %v134 = vld [vmem:[%s2] sm:$0x1]
    %v136 = vlaneseq
    %v137 = vshrl.u32 %v136, 7
    %v138 = vsub.s32 0, %v137
    %v139 = vrot.slane %v134, %v138
    %v157 = vunpack.c.l.b16 %v102
    %v158 = vunpack.c.l.b16 %v103
    %v159 = vunpack.c.l.b16 %v104
    %v160 = vunpack.c.l.b16 %v105
    %v161 = vunpack.c.l.b16 %v106
    %v162 = vunpack.c.l.b16 %v107
    %v163 = vunpack.c.l.b16 %v108
    %v164 = vunpack.c.l.b16 %v109
    %v165 = vunpack.c.l.b16 %v110
    %v166 = vunpack.c.l.b16 %v111
    %v167 = vunpack.c.l.b16 %v112
    %v168 = vunpack.c.l.b16 %v113
    %v169 = vunpack.c.l.b16 %v114
    %v170 = vunpack.c.l.b16 %v115
    %v171 = vunpack.c.l.b16 %v116
    %v172 = vunpack.c.l.b16 %v117
    %v173 = vpack.c.b16 %v158, %v157
    %v174 = vpack.c.b16 %v160, %v159
    %v175 = vpack.c.b16 %v162, %v161
    %v176 = vpack.c.b16 %v164, %v163
    %v177 = vpack.c.b16 %v166, %v165
    %v178 = vpack.c.b16 %v168, %v167
    %v179 = vpack.c.b16 %v170, %v169
    %v180 = vpack.c.b16 %v172, %v171
    %v205 = vunpack.c.l.b16 %v118
    %v206 = vunpack.c.l.b16 %v119
    %v207 = vunpack.c.l.b16 %v120
    %v208 = vunpack.c.l.b16 %v121
    %v209 = vunpack.c.l.b16 %v122
    %v210 = vunpack.c.l.b16 %v123
    %v211 = vunpack.c.l.b16 %v124
    %v212 = vunpack.c.l.b16 %v125
    %v213 = vunpack.c.l.b16 %v126
    %v214 = vunpack.c.l.b16 %v127
    %v215 = vunpack.c.l.b16 %v128
    %v216 = vunpack.c.l.b16 %v129
    %v217 = vunpack.c.l.b16 %v130
    %v218 = vunpack.c.l.b16 %v131
    %v219 = vunpack.c.l.b16 %v132
    %v220 = vunpack.c.l.b16 %v133
    %v221 = vpack.c.b16 %v206, %v205
    %v222 = vpack.c.b16 %v208, %v207
    %v223 = vpack.c.b16 %v210, %v209
    %v224 = vpack.c.b16 %v212, %v211
    %v225 = vpack.c.b16 %v214, %v213
    %v226 = vpack.c.b16 %v216, %v215
    %v227 = vpack.c.b16 %v218, %v217
    %v228 = vpack.c.b16 %v220, %v219
    %237 = vmatprep.subr.bf16.mxu0 0
    %238 = vmatpush1.bf16.msra.mxu0 %v228
    %239 = vmatprep.subr.bf16.mxu0 0
    %240 = vmatpush1.bf16.msra.mxu0 %v227
    %241 = vmatprep.subr.bf16.mxu0 0
    %242 = vmatpush1.bf16.msra.mxu0 %v226
    %243 = vmatprep.subr.bf16.mxu0 0
    %244 = vmatpush1.bf16.msra.mxu0 %v225
    %245 = vmatprep.subr.bf16.mxu0 0
    %246 = vmatpush1.bf16.msra.mxu0 %v224
    %247 = vmatprep.subr.bf16.mxu0 0
    %248 = vmatpush1.bf16.msra.mxu0 %v223
    %249 = vmatprep.subr.bf16.mxu0 0
    %250 = vmatpush1.bf16.msra.mxu0 %v222
    %251 = vmatprep.subr.bf16.mxu0 0
    %252 = vmatpush1.bf16.msra.mxu0 %v221
    %253 = vmatprep.subr.bf16.mxu0 0
    %254 = vmatpush2.bf16.msra.mxu0 0
    %255 = vmatprep.subr.bf16.mxu0 0
    %256 = vmatpush2.bf16.msra.mxu0 0
    %257 = vmatprep.subr.bf16.mxu0 0
    %258 = vmatpush2.bf16.msra.mxu0 0
    %259 = vmatprep.subr.bf16.mxu0 0
    %260 = vmatpush2.bf16.msra.mxu0 0
    %261 = vmatprep.subr.bf16.mxu0 0
    %262 = vmatpush2.bf16.msra.mxu0 0
    %263 = vmatprep.subr.bf16.mxu0 0
    %264 = vmatpush2.bf16.msra.mxu0 0
    %265 = vmatprep.subr.bf16.mxu0 0
    %266 = vmatpush2.bf16.msra.mxu0 0
    %267 = vmatprep.subr.bf16.mxu0 0
    %268 = vmatpush2.bf16.msra.mxu0 0
    %269 = vmatprep.mubr.bf16.mxu0 0
    %270 = vmatmul.mubr.bf16.gmra.mxu0 %v173
    %v271 = vpop.f32.mrf.mxu0
    %v272 = vadd.f32 %v139, %v271
    %v273 = vpop.f32.mrf.mxu0
    %v274 = vpop.f32.mrf.mxu0
    %v275 = vadd.f32 %v139, %v274
    %v276 = vpop.f32.mrf.mxu0
    %277 = vmatprep.mubr.bf16.mxu0 0
    %278 = vmatmul.mubr.bf16.gmra.mxu0 %v174
    %v279 = vpop.f32.mrf.mxu0
    %v280 = vadd.f32 %v139, %v279
    %v281 = vpop.f32.mrf.mxu0
    %v282 = vpop.f32.mrf.mxu0
    %v283 = vadd.f32 %v139, %v282
    %v284 = vpop.f32.mrf.mxu0
    %285 = vmatprep.mubr.bf16.mxu0 0
    %286 = vmatmul.mubr.bf16.gmra.mxu0 %v175
    %v287 = vpop.f32.mrf.mxu0
    %v288 = vadd.f32 %v139, %v287
    %v289 = vpop.f32.mrf.mxu0
    %v290 = vpop.f32.mrf.mxu0
    %v291 = vadd.f32 %v139, %v290
    %v292 = vpop.f32.mrf.mxu0
    %293 = vmatprep.mubr.bf16.mxu0 0
    %294 = vmatmul.mubr.bf16.gmra.mxu0 %v176
    %v295 = vpop.f32.mrf.mxu0
    %v296 = vadd.f32 %v139, %v295
    %v297 = vpop.f32.mrf.mxu0
    %v298 = vpop.f32.mrf.mxu0
    %v299 = vadd.f32 %v139, %v298
    %v300 = vpop.f32.mrf.mxu0
    %301 = vmatprep.mubr.bf16.mxu0 0
    %302 = vmatmul.mubr.bf16.gmra.mxu0 %v177
    %v303 = vpop.f32.mrf.mxu0
    %v304 = vadd.f32 %v139, %v303
    %v305 = vpop.f32.mrf.mxu0
    %v306 = vpop.f32.mrf.mxu0
    %v307 = vadd.f32 %v139, %v306
    %v308 = vpop.f32.mrf.mxu0
    %309 = vmatprep.mubr.bf16.mxu0 0
    %310 = vmatmul.mubr.bf16.gmra.mxu0 %v178
    %v311 = vpop.f32.mrf.mxu0
    %v312 = vadd.f32 %v139, %v311
    %v313 = vpop.f32.mrf.mxu0
    %v314 = vpop.f32.mrf.mxu0
    %v315 = vadd.f32 %v139, %v314
    %v316 = vpop.f32.mrf.mxu0
    %317 = vmatprep.mubr.bf16.mxu0 0
    %318 = vmatmul.mubr.bf16.gmra.mxu0 %v179
    %v319 = vpop.f32.mrf.mxu0
    %v320 = vadd.f32 %v139, %v319
    %v321 = vpop.f32.mrf.mxu0
    %v322 = vpop.f32.mrf.mxu0
    %v323 = vadd.f32 %v139, %v322
    %v324 = vpop.f32.mrf.mxu0
    %325 = vmatprep.mubr.bf16.mxu0 0
    %326 = vmatmul.mubr.bf16.gmra.mxu0 %v180
    %v327 = vpop.f32.mrf.mxu0
    %v328 = vadd.f32 %v139, %v327
    %v329 = vpop.f32.mrf.mxu0
    %v330 = vpop.f32.mrf.mxu0
    %v331 = vadd.f32 %v139, %v330
    %v332 = vpop.f32.mrf.mxu0
    %333 = vdwg.mxu0
    %v334 = vpack.c.bf16 %v275, %v272
    %v335 = vpack.c.bf16 %v283, %v280
    %v336 = vpack.c.bf16 %v291, %v288
    %v337 = vpack.c.bf16 %v299, %v296
    %v338 = vpack.c.bf16 %v307, %v304
    %v339 = vpack.c.bf16 %v315, %v312
    %v340 = vpack.c.bf16 %v323, %v320
    %v341 = vpack.c.bf16 %v331, %v328
    %p343 = scmp.ne.f32.partialorder %s100, %s100
    %s344 = sshrl.u32 %s100, 16
    %s345 = sand.u32 %s344, 1
    %s346 = sadd.s32 32767, %s345
    %s347 = sadd.s32 %s100, %s346
    %s348 = sand.u32 %s347, 4294901760
    %s349 = scalar_select %p343, 2143289344, %s348
    %s351 = sshrl.u32 %s349, 16
    %s352 = sshll.u32 %s351, 16
    %s353 = sor.u32 %s351, %s352
    %v354 = vstv %s353
    %v356 = vmul.bf16 %v334, %v354
    %v357 = vmul.bf16 %v335, %v354
    %v358 = vmul.bf16 %v336, %v354
    %v359 = vmul.bf16 %v337, %v354
    %v360 = vmul.bf16 %v338, %v354
    %v361 = vmul.bf16 %v339, %v354
    %v362 = vmul.bf16 %v340, %v354
    %v363 = vmul.bf16 %v341, %v354
    %v364 = vxor.u32 %v356, 2147516416
    %v365 = vxor.u32 %v357, 2147516416
    %v366 = vxor.u32 %v358, 2147516416
    %v367 = vxor.u32 %v359, 2147516416
    %v368 = vxor.u32 %v360, 2147516416
    %v369 = vxor.u32 %v361, 2147516416
    %v370 = vxor.u32 %v362, 2147516416
    %v371 = vxor.u32 %v363, 2147516416
    %v373 = vmul.bf16 %v364, 1069105081
    %v374 = vpow.bf16.pop %v373
    %v376 = vmul.bf16 %v365, 1069105081
    %v377 = vpow.bf16.pop %v376
    %v379 = vmul.bf16 %v366, 1069105081
    %v380 = vpow.bf16.pop %v379
    %v382 = vmul.bf16 %v367, 1069105081
    %v383 = vpow.bf16.pop %v382
    %v385 = vmul.bf16 %v368, 1069105081
    %v386 = vpow.bf16.pop %v385
    %v388 = vmul.bf16 %v369, 1069105081
    %v389 = vpow.bf16.pop %v388
    %v391 = vmul.bf16 %v370, 1069105081
    %v392 = vpow.bf16.pop %v391
    %v394 = vmul.bf16 %v371, 1069105081
    %v395 = vpow.bf16.pop %v394
    %v396 = vadd.bf16 %v374, 1065369472
    %v397 = vadd.bf16 %v377, 1065369472
    %v398 = vadd.bf16 %v380, 1065369472
    %v399 = vadd.bf16 %v383, 1065369472
    %v400 = vadd.bf16 %v386, 1065369472
    %v401 = vadd.bf16 %v389, 1065369472
    %v402 = vadd.bf16 %v392, 1065369472
    %v403 = vadd.bf16 %v395, 1065369472
    %v404 = vrcp.bf16.pop %v396
    %v405 = vmul.bf16 1065369472, %v404
    %v406 = vrcp.bf16.pop %v397
    %v407 = vmul.bf16 1065369472, %v406
    %v408 = vrcp.bf16.pop %v398
    %v409 = vmul.bf16 1065369472, %v408
    %v410 = vrcp.bf16.pop %v399
    %v411 = vmul.bf16 1065369472, %v410
    %v412 = vrcp.bf16.pop %v400
    %v413 = vmul.bf16 1065369472, %v412
    %v414 = vrcp.bf16.pop %v401
    %v415 = vmul.bf16 1065369472, %v414
    %v416 = vrcp.bf16.pop %v402
    %v417 = vmul.bf16 1065369472, %v416
    %v418 = vrcp.bf16.pop %v403
    %v419 = vmul.bf16 1065369472, %v418
    %v420 = vmul.bf16 %v334, %v405
    %v421 = vmul.bf16 %v335, %v407
    %v422 = vmul.bf16 %v336, %v409
    %v423 = vmul.bf16 %v337, %v411
    %v424 = vmul.bf16 %v338, %v413
    %v425 = vmul.bf16 %v339, %v415
    %v426 = vmul.bf16 %v340, %v417
    %v427 = vmul.bf16 %v341, %v419
    %v428 = vld [vmem:[#allocation8] sm:$0xf]
    %v429 = vld [vmem:[#allocation8 + $0x4] sm:$0xf]
    %v430 = vld [vmem:[#allocation8 + $0x8] sm:$0xf]
    %v431 = vld [vmem:[#allocation8 + $0xc] sm:$0xf]
    %v432 = vld [vmem:[#allocation8 + $0x10] sm:$0xf]
    %v433 = vld [vmem:[#allocation8 + $0x14] sm:$0xf]
    %v434 = vld [vmem:[#allocation8 + $0x18] sm:$0xf]
    %v435 = vld [vmem:[#allocation8 + $0x1c] sm:$0xf]
    %v436 = vld [vmem:[#allocation8 + $0x20] sm:$0xf]
    %v437 = vld [vmem:[#allocation8 + $0x24] sm:$0xf]
    %v438 = vld [vmem:[#allocation8 + $0x28] sm:$0xf]
    %v439 = vld [vmem:[#allocation8 + $0x2c] sm:$0xf]
    %v440 = vld [vmem:[#allocation8 + $0x30] sm:$0xf]
    %v441 = vld [vmem:[#allocation8 + $0x34] sm:$0xf]
    %v442 = vld [vmem:[#allocation8 + $0x38] sm:$0xf]
    %v443 = vld [vmem:[#allocation8 + $0x3c] sm:$0xf]
    %v444 = vld [vmem:[%s4] sm:$0x1]
    %v446 = vlaneseq
    %v447 = vshrl.u32 %v446, 7
    %v448 = vsub.s32 0, %v447
    %v449 = vrot.slane %v444, %v448
    %v467 = vunpack.c.l.b16 %v428
    %v468 = vunpack.c.l.b16 %v429
    %v469 = vunpack.c.l.b16 %v430
    %v470 = vunpack.c.l.b16 %v431
    %v471 = vunpack.c.l.b16 %v432
    %v472 = vunpack.c.l.b16 %v433
    %v473 = vunpack.c.l.b16 %v434
    %v474 = vunpack.c.l.b16 %v435
    %v475 = vunpack.c.l.b16 %v436
    %v476 = vunpack.c.l.b16 %v437
    %v477 = vunpack.c.l.b16 %v438
    %v478 = vunpack.c.l.b16 %v439
    %v479 = vunpack.c.l.b16 %v440
    %v480 = vunpack.c.l.b16 %v441
    %v481 = vunpack.c.l.b16 %v442
    %v482 = vunpack.c.l.b16 %v443
    %v483 = vpack.c.b16 %v468, %v467
    %v484 = vpack.c.b16 %v470, %v469
    %v485 = vpack.c.b16 %v472, %v471
    %v486 = vpack.c.b16 %v474, %v473
    %v487 = vpack.c.b16 %v476, %v475
    %v488 = vpack.c.b16 %v478, %v477
    %v489 = vpack.c.b16 %v480, %v479
    %v490 = vpack.c.b16 %v482, %v481
    %499 = vmatprep.subr.bf16.mxu0 0
    %500 = vmatpush1.bf16.msra.mxu0 %v490
    %501 = vmatprep.subr.bf16.mxu0 0
    %502 = vmatpush1.bf16.msra.mxu0 %v489
    %503 = vmatprep.subr.bf16.mxu0 0
    %504 = vmatpush1.bf16.msra.mxu0 %v488
    %505 = vmatprep.subr.bf16.mxu0 0
    %506 = vmatpush1.bf16.msra.mxu0 %v487
    %507 = vmatprep.subr.bf16.mxu0 0
    %508 = vmatpush1.bf16.msra.mxu0 %v486
    %509 = vmatprep.subr.bf16.mxu0 0
    %510 = vmatpush1.bf16.msra.mxu0 %v485
    %511 = vmatprep.subr.bf16.mxu0 0
    %512 = vmatpush1.bf16.msra.mxu0 %v484
    %513 = vmatprep.subr.bf16.mxu0 0
    %514 = vmatpush1.bf16.msra.mxu0 %v483
    %515 = vmatprep.subr.bf16.mxu0 0
    %516 = vmatpush2.bf16.msra.mxu0 0
    %517 = vmatprep.subr.bf16.mxu0 0
    %518 = vmatpush2.bf16.msra.mxu0 0
    %519 = vmatprep.subr.bf16.mxu0 0
    %520 = vmatpush2.bf16.msra.mxu0 0
    %521 = vmatprep.subr.bf16.mxu0 0
    %522 = vmatpush2.bf16.msra.mxu0 0
    %523 = vmatprep.subr.bf16.mxu0 0
    %524 = vmatpush2.bf16.msra.mxu0 0
    %525 = vmatprep.subr.bf16.mxu0 0
    %526 = vmatpush2.bf16.msra.mxu0 0
    %527 = vmatprep.subr.bf16.mxu0 0
    %528 = vmatpush2.bf16.msra.mxu0 0
    %529 = vmatprep.subr.bf16.mxu0 0
    %530 = vmatpush2.bf16.msra.mxu0 0
    %531 = vmatprep.mubr.bf16.mxu0 0
    %532 = vmatmul.mubr.bf16.gmra.mxu0 %v420
    %v533 = vpop.f32.mrf.mxu0
    %v534 = vadd.f32 %v449, %v533
    %v535 = vpop.f32.mrf.mxu0
    %v536 = vpop.f32.mrf.mxu0
    %v537 = vadd.f32 %v449, %v536
    %v538 = vpop.f32.mrf.mxu0
    %539 = vmatprep.mubr.bf16.mxu0 0
    %540 = vmatmul.mubr.bf16.gmra.mxu0 %v421
    %v541 = vpop.f32.mrf.mxu0
    %v542 = vadd.f32 %v449, %v541
    %v543 = vpop.f32.mrf.mxu0
    %v544 = vpop.f32.mrf.mxu0
    %v545 = vadd.f32 %v449, %v544
    %v546 = vpop.f32.mrf.mxu0
    %547 = vmatprep.mubr.bf16.mxu0 0
    %548 = vmatmul.mubr.bf16.gmra.mxu0 %v422
    %v549 = vpop.f32.mrf.mxu0
    %v550 = vadd.f32 %v449, %v549
    %v551 = vpop.f32.mrf.mxu0
    %v552 = vpop.f32.mrf.mxu0
    %v553 = vadd.f32 %v449, %v552
    %v554 = vpop.f32.mrf.mxu0
    %555 = vmatprep.mubr.bf16.mxu0 0
    %556 = vmatmul.mubr.bf16.gmra.mxu0 %v423
    %v557 = vpop.f32.mrf.mxu0
    %v558 = vadd.f32 %v449, %v557
    %v559 = vpop.f32.mrf.mxu0
    %v560 = vpop.f32.mrf.mxu0
    %v561 = vadd.f32 %v449, %v560
    %v562 = vpop.f32.mrf.mxu0
    %563 = vmatprep.mubr.bf16.mxu0 0
    %564 = vmatmul.mubr.bf16.gmra.mxu0 %v424
    %v565 = vpop.f32.mrf.mxu0
    %v566 = vadd.f32 %v449, %v565
    %v567 = vpop.f32.mrf.mxu0
    %v568 = vpop.f32.mrf.mxu0
    %v569 = vadd.f32 %v449, %v568
    %v570 = vpop.f32.mrf.mxu0
    %571 = vmatprep.mubr.bf16.mxu0 0
    %572 = vmatmul.mubr.bf16.gmra.mxu0 %v425
    %v573 = vpop.f32.mrf.mxu0
    %v574 = vadd.f32 %v449, %v573
    %v575 = vpop.f32.mrf.mxu0
    %v576 = vpop.f32.mrf.mxu0
    %v577 = vadd.f32 %v449, %v576
    %v578 = vpop.f32.mrf.mxu0
    %579 = vmatprep.mubr.bf16.mxu0 0
    %580 = vmatmul.mubr.bf16.gmra.mxu0 %v426
    %v581 = vpop.f32.mrf.mxu0
    %v582 = vadd.f32 %v449, %v581
    %v583 = vpop.f32.mrf.mxu0
    %v584 = vpop.f32.mrf.mxu0
    %v585 = vadd.f32 %v449, %v584
    %v586 = vpop.f32.mrf.mxu0
    %587 = vmatprep.mubr.bf16.mxu0 0
    %588 = vmatmul.mubr.bf16.gmra.mxu0 %v427
    %v589 = vpop.f32.mrf.mxu0
    %v590 = vadd.f32 %v449, %v589
    %v591 = vpop.f32.mrf.mxu0
    %v592 = vpop.f32.mrf.mxu0
    %v593 = vadd.f32 %v449, %v592
    %v594 = vpop.f32.mrf.mxu0
    %595 = vdwg.mxu0
    %v596 = vpack.c.bf16 %v537, %v534
    %v597 = vpack.c.bf16 %v545, %v542
    %v598 = vpack.c.bf16 %v553, %v550
    %v599 = vpack.c.bf16 %v561, %v558
    %v600 = vpack.c.bf16 %v569, %v566
    %v601 = vpack.c.bf16 %v577, %v574
    %v602 = vpack.c.bf16 %v585, %v582
    %v603 = vpack.c.bf16 %v593, %v590
    %p605 = scmp.ne.f32.partialorder %s101, %s101
    %s606 = sshrl.u32 %s101, 16
    %s607 = sand.u32 %s606, 1
    %s608 = sadd.s32 32767, %s607
    %s609 = sadd.s32 %s101, %s608
    %s610 = sand.u32 %s609, 4294901760
    %s611 = scalar_select %p605, 2143289344, %s610
    %s613 = sshrl.u32 %s611, 16
    %s614 = sshll.u32 %s613, 16
    %s615 = sor.u32 %s613, %s614
    %v616 = vstv %s615
    %v618 = vmul.bf16 %v596, %v616
    %v619 = vmul.bf16 %v597, %v616
    %v620 = vmul.bf16 %v598, %v616
    %v621 = vmul.bf16 %v599, %v616
    %v622 = vmul.bf16 %v600, %v616
    %v623 = vmul.bf16 %v601, %v616
    %v624 = vmul.bf16 %v602, %v616
    %v625 = vmul.bf16 %v603, %v616
    %v626 = vxor.u32 %v618, 2147516416
    %v627 = vxor.u32 %v619, 2147516416
    %v628 = vxor.u32 %v620, 2147516416
    %v629 = vxor.u32 %v621, 2147516416
    %v630 = vxor.u32 %v622, 2147516416
    %v631 = vxor.u32 %v623, 2147516416
    %v632 = vxor.u32 %v624, 2147516416
    %v633 = vxor.u32 %v625, 2147516416
    %v635 = vmul.bf16 %v626, 1069105081
    %v636 = vpow.bf16.pop %v635
    %v638 = vmul.bf16 %v627, 1069105081
    %v639 = vpow.bf16.pop %v638
    %v641 = vmul.bf16 %v628, 1069105081
    %v642 = vpow.bf16.pop %v641
    %v644 = vmul.bf16 %v629, 1069105081
    %v645 = vpow.bf16.pop %v644
    %v647 = vmul.bf16 %v630, 1069105081
    %v648 = vpow.bf16.pop %v647
    %v650 = vmul.bf16 %v631, 1069105081
    %v651 = vpow.bf16.pop %v650
    %v653 = vmul.bf16 %v632, 1069105081
    %v654 = vpow.bf16.pop %v653
    %v656 = vmul.bf16 %v633, 1069105081
    %v657 = vpow.bf16.pop %v656
    %v658 = vadd.bf16 %v636, 1065369472
    %v659 = vadd.bf16 %v639, 1065369472
    %v660 = vadd.bf16 %v642, 1065369472
    %v661 = vadd.bf16 %v645, 1065369472
    %v662 = vadd.bf16 %v648, 1065369472
    %v663 = vadd.bf16 %v651, 1065369472
    %v664 = vadd.bf16 %v654, 1065369472
    %v665 = vadd.bf16 %v657, 1065369472
    %v666 = vrcp.bf16.pop %v658
    %v667 = vmul.bf16 1065369472, %v666
    %v668 = vrcp.bf16.pop %v659
    %v669 = vmul.bf16 1065369472, %v668
    %v670 = vrcp.bf16.pop %v660
    %v671 = vmul.bf16 1065369472, %v670
    %v672 = vrcp.bf16.pop %v661
    %v673 = vmul.bf16 1065369472, %v672
    %v674 = vrcp.bf16.pop %v662
    %v675 = vmul.bf16 1065369472, %v674
    %v676 = vrcp.bf16.pop %v663
    %v677 = vmul.bf16 1065369472, %v676
    %v678 = vrcp.bf16.pop %v664
    %v679 = vmul.bf16 1065369472, %v678
    %v680 = vrcp.bf16.pop %v665
    %v681 = vmul.bf16 1065369472, %v680
    %v682 = vmul.bf16 %v596, %v667
    %v683 = vmul.bf16 %v597, %v669
    %v684 = vmul.bf16 %v598, %v671
    %v685 = vmul.bf16 %v599, %v673
    %v686 = vmul.bf16 %v600, %v675
    %v687 = vmul.bf16 %v601, %v677
    %v688 = vmul.bf16 %v602, %v679
    %v689 = vmul.bf16 %v603, %v681
    %v690 = vld [vmem:[#allocation9] sm:$0xf]
    %v691 = vld [vmem:[#allocation9 + $0x4] sm:$0xf]
    %v692 = vld [vmem:[#allocation9 + $0x8] sm:$0xf]
    %v693 = vld [vmem:[#allocation9 + $0xc] sm:$0xf]
    %v694 = vld [vmem:[#allocation9 + $0x10] sm:$0xf]
    %v695 = vld [vmem:[#allocation9 + $0x14] sm:$0xf]
    %v696 = vld [vmem:[#allocation9 + $0x18] sm:$0xf]
    %v697 = vld [vmem:[#allocation9 + $0x1c] sm:$0xf]
    %v698 = vld [vmem:[#allocation9 + $0x20] sm:$0xf]
    %v699 = vld [vmem:[#allocation9 + $0x24] sm:$0xf]
    %v700 = vld [vmem:[#allocation9 + $0x28] sm:$0xf]
    %v701 = vld [vmem:[#allocation9 + $0x2c] sm:$0xf]
    %v702 = vld [vmem:[#allocation9 + $0x30] sm:$0xf]
    %v703 = vld [vmem:[#allocation9 + $0x34] sm:$0xf]
    %v704 = vld [vmem:[#allocation9 + $0x38] sm:$0xf]
    %v705 = vld [vmem:[#allocation9 + $0x3c] sm:$0xf]
    %v706 = vld [vmem:[%s6] sm:$0x1]
    %v708 = vlaneseq
    %v709 = vshrl.u32 %v708, 7
    %v710 = vsub.s32 0, %v709
    %v711 = vrot.slane %v706, %v710
    %v729 = vunpack.c.l.b16 %v690
    %v730 = vunpack.c.l.b16 %v691
    %v731 = vunpack.c.l.b16 %v692
    %v732 = vunpack.c.l.b16 %v693
    %v733 = vunpack.c.l.b16 %v694
    %v734 = vunpack.c.l.b16 %v695
    %v735 = vunpack.c.l.b16 %v696
    %v736 = vunpack.c.l.b16 %v697
    %v737 = vunpack.c.l.b16 %v698
    %v738 = vunpack.c.l.b16 %v699
    %v739 = vunpack.c.l.b16 %v700
    %v740 = vunpack.c.l.b16 %v701
    %v741 = vunpack.c.l.b16 %v702
    %v742 = vunpack.c.l.b16 %v703
    %v743 = vunpack.c.l.b16 %v704
    %v744 = vunpack.c.l.b16 %v705
    %v745 = vpack.c.b16 %v730, %v729
    %v746 = vpack.c.b16 %v732, %v731
    %v747 = vpack.c.b16 %v734, %v733
    %v748 = vpack.c.b16 %v736, %v735
    %v749 = vpack.c.b16 %v738, %v737
    %v750 = vpack.c.b16 %v740, %v739
    %v751 = vpack.c.b16 %v742, %v741
    %v752 = vpack.c.b16 %v744, %v743
    %761 = vmatprep.subr.bf16.mxu0 0
    %762 = vmatpush1.bf16.msra.mxu0 %v752
    %763 = vmatprep.subr.bf16.mxu0 0
    %764 = vmatpush1.bf16.msra.mxu0 %v751
    %765 = vmatprep.subr.bf16.mxu0 0
    %766 = vmatpush1.bf16.msra.mxu0 %v750
    %767 = vmatprep.subr.bf16.mxu0 0
    %768 = vmatpush1.bf16.msra.mxu0 %v749
    %769 = vmatprep.subr.bf16.mxu0 0
    %770 = vmatpush1.bf16.msra.mxu0 %v748
    %771 = vmatprep.subr.bf16.mxu0 0
    %772 = vmatpush1.bf16.msra.mxu0 %v747
    %773 = vmatprep.subr.bf16.mxu0 0
    %774 = vmatpush1.bf16.msra.mxu0 %v746
    %775 = vmatprep.subr.bf16.mxu0 0
    %776 = vmatpush1.bf16.msra.mxu0 %v745
    %777 = vmatprep.subr.bf16.mxu0 0
    %778 = vmatpush2.bf16.msra.mxu0 0
    %779 = vmatprep.subr.bf16.mxu0 0
    %780 = vmatpush2.bf16.msra.mxu0 0
    %781 = vmatprep.subr.bf16.mxu0 0
    %782 = vmatpush2.bf16.msra.mxu0 0
    %783 = vmatprep.subr.bf16.mxu0 0
    %784 = vmatpush2.bf16.msra.mxu0 0
    %785 = vmatprep.subr.bf16.mxu0 0
    %786 = vmatpush2.bf16.msra.mxu0 0
    %787 = vmatprep.subr.bf16.mxu0 0
    %788 = vmatpush2.bf16.msra.mxu0 0
    %789 = vmatprep.subr.bf16.mxu0 0
    %790 = vmatpush2.bf16.msra.mxu0 0
    %791 = vmatprep.subr.bf16.mxu0 0
    %792 = vmatpush2.bf16.msra.mxu0 0
    %793 = vmatprep.mubr.bf16.mxu0 0
    %794 = vmatmul.mubr.bf16.gmra.mxu0 %v682
    %v795 = vpop.f32.mrf.mxu0
    %v796 = vadd.f32 %v711, %v795
    %v797 = vpop.f32.mrf.mxu0
    %v798 = vpop.f32.mrf.mxu0
    %v799 = vadd.f32 %v711, %v798
    %v800 = vpop.f32.mrf.mxu0
    %801 = vmatprep.mubr.bf16.mxu0 0
    %802 = vmatmul.mubr.bf16.gmra.mxu0 %v683
    %v803 = vpop.f32.mrf.mxu0
    %v804 = vadd.f32 %v711, %v803
    %v805 = vpop.f32.mrf.mxu0
    %v806 = vpop.f32.mrf.mxu0
    %v807 = vadd.f32 %v711, %v806
    %v808 = vpop.f32.mrf.mxu0
    %809 = vmatprep.mubr.bf16.mxu0 0
    %810 = vmatmul.mubr.bf16.gmra.mxu0 %v684
    %v811 = vpop.f32.mrf.mxu0
    %v812 = vadd.f32 %v711, %v811
    %v813 = vpop.f32.mrf.mxu0
    %v814 = vpop.f32.mrf.mxu0
    %v815 = vadd.f32 %v711, %v814
    %v816 = vpop.f32.mrf.mxu0
    %817 = vmatprep.mubr.bf16.mxu0 0
    %818 = vmatmul.mubr.bf16.gmra.mxu0 %v685
    %v819 = vpop.f32.mrf.mxu0
    %v820 = vadd.f32 %v711, %v819
    %v821 = vpop.f32.mrf.mxu0
    %v822 = vpop.f32.mrf.mxu0
    %v823 = vadd.f32 %v711, %v822
    %v824 = vpop.f32.mrf.mxu0
    %825 = vmatprep.mubr.bf16.mxu0 0
    %826 = vmatmul.mubr.bf16.gmra.mxu0 %v686
    %v827 = vpop.f32.mrf.mxu0
    %v828 = vadd.f32 %v711, %v827
    %v829 = vpop.f32.mrf.mxu0
    %v830 = vpop.f32.mrf.mxu0
    %v831 = vadd.f32 %v711, %v830
    %v832 = vpop.f32.mrf.mxu0
    %833 = vmatprep.mubr.bf16.mxu0 0
    %834 = vmatmul.mubr.bf16.gmra.mxu0 %v687
    %v835 = vpop.f32.mrf.mxu0
    %v836 = vadd.f32 %v711, %v835
    %v837 = vpop.f32.mrf.mxu0
    %v838 = vpop.f32.mrf.mxu0
    %v839 = vadd.f32 %v711, %v838
    %v840 = vpop.f32.mrf.mxu0
    %841 = vmatprep.mubr.bf16.mxu0 0
    %842 = vmatmul.mubr.bf16.gmra.mxu0 %v688
    %v843 = vpop.f32.mrf.mxu0
    %v844 = vadd.f32 %v711, %v843
    %v845 = vpop.f32.mrf.mxu0
    %v846 = vpop.f32.mrf.mxu0
    %v847 = vadd.f32 %v711, %v846
    %v848 = vpop.f32.mrf.mxu0
    %849 = vmatprep.mubr.bf16.mxu0 0
    %850 = vmatmul.mubr.bf16.gmra.mxu0 %v689
    %v851 = vpop.f32.mrf.mxu0
    %v852 = vadd.f32 %v711, %v851
    %v853 = vpop.f32.mrf.mxu0
    %v854 = vpop.f32.mrf.mxu0
    %v855 = vadd.f32 %v711, %v854
    %v856 = vpop.f32.mrf.mxu0
    %857 = vdwg.mxu0
    %858 = vst [vmem:[#allocation12] sm:$0xff] %v796
    %859 = vst [vmem:[#allocation12 + $0x8] sm:$0xff] %v799
    %860 = vst [vmem:[#allocation12 + $0x10] sm:$0xff] %v804
    %861 = vst [vmem:[#allocation12 + $0x18] sm:$0xff] %v807
    %862 = vst [vmem:[#allocation12 + $0x20] sm:$0xff] %v812
    %863 = vst [vmem:[#allocation12 + $0x28] sm:$0xff] %v815
    %864 = vst [vmem:[#allocation12 + $0x30] sm:$0xff] %v820
    %865 = vst [vmem:[#allocation12 + $0x38] sm:$0xff] %v823
    %866 = vst [vmem:[#allocation12 + $0x40] sm:$0xff] %v828
    %867 = vst [vmem:[#allocation12 + $0x48] sm:$0xff] %v831
    %868 = vst [vmem:[#allocation12 + $0x50] sm:$0xff] %v836
    %869 = vst [vmem:[#allocation12 + $0x58] sm:$0xff] %v839
    %870 = vst [vmem:[#allocation12 + $0x60] sm:$0xff] %v844
    %871 = vst [vmem:[#allocation12 + $0x68] sm:$0xff] %v847
    %872 = vst [vmem:[#allocation12 + $0x70] sm:$0xff] %v852
    %873 = vst [vmem:[#allocation12 + $0x78] sm:$0xff] %v855
    // Predicated region
    $region54: #{tpu_custom_call.1} parent=1 // pred_check
      _
    $region55: #{tpu_custom_call.1} parent=1 // pred_check_branch
      %875 = sbr.rel (0) target = $region57
    $region56: #{tpu_custom_call.1} parent=1 // pred_region
      %s877 = ssub.s32 2048, 2048
      %878 = vsyncadd [#allocation4], %s877
      %s879 = sshll.u32 [#allocation12], 4
      %s880 = int_to_ptr.vmem [resolvable:$true] %s879
      %885 = dma.vmem_to_hbm [thread:$0]  %s880, 2048, %s8, [#allocation4], 128, 128, 8
    $region57: #{tpu_custom_call.1} parent=1 // pred_fallthru
      _
    // Predicated region
    $region58: #{tpu_custom_call.1} parent=1 // pred_check
      _
    $region59: #{tpu_custom_call.1} parent=1 // pred_check_branch
      %887 = sbr.rel (0) target = $region61
    $region60: #{tpu_custom_call.1} parent=1 // pred_region
      %888 = dma.done [#allocation4], 2048
    $region61: #{tpu_custom_call.1} parent=1 // pred_fallthru
      _
    %889 = vsyncpa [#allocation3], 1
    %890 = vsyncpa [#allocation7], 1
    %891 = vsyncpa [#allocation10], 1
    %892 = vsyncpa [#allocation4], 1
    %893 = vsyncpa [#allocation5], 1

// kernel: tpu_custom_call.1
$region0: #{tpu_custom_call.1}
  #allocation0 [shape = 'u32[]', space=smem, size = 0x4, offset = 0x4, fixed_abs, tag = 'smem constant byte address 0x4 - core index']
  #allocation1 [shape = 'u32[144,128]{1,0:T(1,128)}', space=vmem, size = 0x12000, scoped, tag = 'internal scratch']
  %s0 = inlined_call_operand.hbm [shape: bf16[128,128], index: 0, kind: input, shape index: {}]
  %s1 = inlined_call_operand.hbm [shape: bf16[128,128], index: 1, kind: input, shape index: {}]
  %s2 = inlined_call_operand.vmem [shape: f32[1,128], index: 2, kind: input, shape index: {}]
  %s3 = inlined_call_operand.hbm [shape: bf16[128,128], index: 3, kind: input, shape index: {}]
  %s4 = inlined_call_operand.vmem [shape: f32[1,128], index: 4, kind: input, shape index: {}]
  %s5 = inlined_call_operand.hbm [shape: bf16[128,128], index: 5, kind: input, shape index: {}]
  %s6 = inlined_call_operand.vmem [shape: f32[1,128], index: 6, kind: input, shape index: {}]
  %s7 = inlined_call_operand.vmem [shape: f32[2], index: 7, kind: input, shape index: {}]
  %s8 = inlined_call_operand.hbm [shape: f32[128,128], index: 8, kind: output, shape index: {}]
  %s9 = sld [smem:[#allocation0]]
  $region62: #{tpu_custom_call.1} parent=0
    _
  %s11 = ssub.s32 1, %s9
  %s12 = scalar_select 0, %s11, %s9
  $region1: #{tpu_custom_call.1} parent=0
    #allocation2 [shape = 'u8[32768]{0}', space=vmem, size = 0x8000, scoped, tag = 'input window, operand 0, single buffered']
    #allocation3 [shape = 's32[1]{0}', space=sflag, size = 0x4, scoped, tag = 'scoped memory for tpu_custom_call.1']
    #allocation4 [shape = 's32[1]{0}', space=sflag, size = 0x4, scoped, tag = 'scoped memory for tpu_custom_call.1']
    #allocation5 [shape = 's32[1]{0}', space=sflag, size = 0x4, scoped, tag = 'scoped memory for tpu_custom_call.1']
    #allocation6 [shape = 'u8[32768]{0}', space=vmem, size = 0x8000, scoped, tag = 'input window, operand 1, single buffered']
    #allocation7 [shape = 's32[1]{0}', space=sflag, size = 0x4, scoped, tag = 'scoped memory for tpu_custom_call.1']
    #allocation8 [shape = 'u8[32768]{0}', space=vmem, size = 0x8000, scoped, tag = 'input window, operand 3, single buffered']
    #allocation9 [shape = 'u8[32768]{0}', space=vmem, size = 0x8000, scoped, tag = 'input window, operand 5, single buffered']
    #allocation10 [shape = 's32[1]{0}', space=sflag, size = 0x4, scoped, tag = 'scoped memory for tpu_custom_call.1']
    #allocation11 [shape = 'u8[512]{0}', space=smem, size = 0x200, scoped, tag = 'input window, operand 7, single buffered']
    #allocation12 [shape = 'u8[65536]{0}', space=vmem, size = 0x10000, scoped, tag = 'output window, operand 0, single buffered']
    %13 = vsyncpa [#allocation3], 0
    %14 = vsyncpa [#allocation7], 0
    %15 = vsyncpa [#allocation10], 0
    %16 = vsyncpa [#allocation5], 0
    %17 = vsyncpa [#allocation4], 0
    // Predicated region
    $region2: #{tpu_custom_call.1} parent=1 // pred_check
      _
    $region3: #{tpu_custom_call.1} parent=1 // pred_check_branch
      %19 = sbr.rel (0) target = $region5
    $region4: #{tpu_custom_call.1} parent=1 // pred_region
      %s21 = ssub.s32 1024, 1024
      %22 = vsyncadd [#allocation3], %s21
      %s23 = sshll.u32 [#allocation2], 4
      %s24 = int_to_ptr.vmem [resolvable:$true] %s23
      %29 = dma.hbm_to_vmem [thread:$0]  %s0, 1024, %s24, [#allocation3], 64, 64, 4
    $region5: #{tpu_custom_call.1} parent=1 // pred_fallthru
      _
    // Predicated region
    $region6: #{tpu_custom_call.1} parent=1 // pred_check
      _
    $region7: #{tpu_custom_call.1} parent=1 // pred_check_branch
      %31 = sbr.rel (0) target = $region9
    $region8: #{tpu_custom_call.1} parent=1 // pred_region
      %s33 = ssub.s32 1024, 1024
      %34 = vsyncadd [#allocation7], %s33
      %s35 = sshll.u32 [#allocation6], 4
      %s36 = int_to_ptr.vmem [resolvable:$true] %s35
      %41 = dma.hbm_to_vmem [thread:$0]  %s1, 1024, %s36, [#allocation7], 64, 64, 4
    $region9: #{tpu_custom_call.1} parent=1 // pred_fallthru
      _
    // Predicated region
    $region10: #{tpu_custom_call.1} parent=1 // pred_check
      _
    $region11: #{tpu_custom_call.1} parent=1 // pred_check_branch
      %43 = sbr.rel (0) target = $region13
    $region12: #{tpu_custom_call.1} parent=1 // pred_region
      _
    $region13: #{tpu_custom_call.1} parent=1 // pred_fallthru
      _
    // Predicated region
    $region14: #{tpu_custom_call.1} parent=1 // pred_check
      _
    $region15: #{tpu_custom_call.1} parent=1 // pred_check_branch
      %45 = sbr.rel (0) target = $region17
    $region16: #{tpu_custom_call.1} parent=1 // pred_region
      %s47 = ssub.s32 1024, 1024
      %48 = vsyncadd [#allocation7], %s47
      %s49 = sshll.u32 [#allocation8], 4
      %s50 = int_to_ptr.vmem [resolvable:$true] %s49
      %55 = dma.hbm_to_vmem [thread:$0]  %s3, 1024, %s50, [#allocation7], 64, 64, 4
    $region17: #{tpu_custom_call.1} parent=1 // pred_fallthru
      _
    // Predicated region
    $region18: #{tpu_custom_call.1} parent=1 // pred_check
      _
    $region19: #{tpu_custom_call.1} parent=1 // pred_check_branch
      %57 = sbr.rel (0) target = $region21
    $region20: #{tpu_custom_call.1} parent=1 // pred_region
      _
    $region21: #{tpu_custom_call.1} parent=1 // pred_fallthru
      _
    // Predicated region
    $region22: #{tpu_custom_call.1} parent=1 // pred_check
      _
    $region23: #{tpu_custom_call.1} parent=1 // pred_check_branch
      %59 = sbr.rel (0) target = $region25
    $region24: #{tpu_custom_call.1} parent=1 // pred_region
      %s61 = ssub.s32 1024, 1024
      %62 = vsyncadd [#allocation10], %s61
      %s63 = sshll.u32 [#allocation9], 4
      %s64 = int_to_ptr.vmem [resolvable:$true] %s63
      %69 = dma.hbm_to_vmem [thread:$0]  %s5, 1024, %s64, [#allocation10], 64, 64, 4
    $region25: #{tpu_custom_call.1} parent=1 // pred_fallthru
      _
    // Predicated region
    $region26: #{tpu_custom_call.1} parent=1 // pred_check
      _
    $region27: #{tpu_custom_call.1} parent=1 // pred_check_branch
      %71 = sbr.rel (0) target = $region29
    $region28: #{tpu_custom_call.1} parent=1 // pred_region
      _
    $region29: #{tpu_custom_call.1} parent=1 // pred_fallthru
      _
    // Predicated region
    $region30: #{tpu_custom_call.1} parent=1 // pred_check
      _
    $region31: #{tpu_custom_call.1} parent=1 // pred_check_branch
      %73 = sbr.rel (0) target = $region33
    $region32: #{tpu_custom_call.1} parent=1 // pred_region
      %s75 = ssub.s32 16, 16
      %76 = vsyncadd [#allocation5], %s75
      %s78 = sshll.u32 %s7, 4
      %s79 = int_to_ptr.vmem [resolvable:$true] %s78
      %81 = dma.vmem_to_smem %s79, 16, [#allocation11], [#allocation5]
    $region33: #{tpu_custom_call.1} parent=1 // pred_fallthru
      _
    // Predicated region
    $region34: #{tpu_custom_call.1} parent=1 // pred_check
      _
    $region35: #{tpu_custom_call.1} parent=1 // pred_check_branch
      %83 = sbr.rel (0) target = $region37
    $region36: #{tpu_custom_call.1} parent=1 // pred_region
      %84 = dma.done [#allocation3], 1024
    $region37: #{tpu_custom_call.1} parent=1 // pred_fallthru
      _
    // Predicated region
    $region38: #{tpu_custom_call.1} parent=1 // pred_check
      _
    $region39: #{tpu_custom_call.1} parent=1 // pred_check_branch
      %86 = sbr.rel (0) target = $region41
    $region40: #{tpu_custom_call.1} parent=1 // pred_region
      %87 = dma.done [#allocation7], 1024
    $region41: #{tpu_custom_call.1} parent=1 // pred_fallthru
      _
    // Predicated region
    $region42: #{tpu_custom_call.1} parent=1 // pred_check
      _
    $region43: #{tpu_custom_call.1} parent=1 // pred_check_branch
      %89 = sbr.rel (0) target = $region45
    $region44: #{tpu_custom_call.1} parent=1 // pred_region
      %90 = dma.done [#allocation7], 1024
    $region45: #{tpu_custom_call.1} parent=1 // pred_fallthru
      _
    // Predicated region
    $region46: #{tpu_custom_call.1} parent=1 // pred_check
      _
    $region47: #{tpu_custom_call.1} parent=1 // pred_check_branch
      %92 = sbr.rel (0) target = $region49
    $region48: #{tpu_custom_call.1} parent=1 // pred_region
      %93 = dma.done [#allocation10], 1024
    $region49: #{tpu_custom_call.1} parent=1 // pred_fallthru
      _
    // Predicated region
    $region50: #{tpu_custom_call.1} parent=1 // pred_check
      _
    $region51: #{tpu_custom_call.1} parent=1 // pred_check_branch
      %95 = sbr.rel (0) target = $region53
    $region52: #{tpu_custom_call.1} parent=1 // pred_region
      %96 = dma.done [#allocation5], 16
    $region53: #{tpu_custom_call.1} parent=1 // pred_fallthru
      _
    %97 = sfence
    %s100 = sld [smem:[#allocation11]]
    %s101 = sld [smem:[#allocation11 + $0x1]]
    %v102 = vld [vmem:[#allocation2] sm:$0xf]
    %v103 = vld [vmem:[#allocation2 + $0x4] sm:$0xf]
    %v104 = vld [vmem:[#allocation2 + $0x8] sm:$0xf]
    %v105 = vld [vmem:[#allocation2 + $0xc] sm:$0xf]
    %v106 = vld [vmem:[#allocation2 + $0x10] sm:$0xf]
    %v107 = vld [vmem:[#allocation2 + $0x14] sm:$0xf]
    %v108 = vld [vmem:[#allocation2 + $0x18] sm:$0xf]
    %v109 = vld [vmem:[#allocation2 + $0x1c] sm:$0xf]
    %v110 = vld [vmem:[#allocation2 + $0x20] sm:$0xf]
    %v111 = vld [vmem:[#allocation2 + $0x24] sm:$0xf]
    %v112 = vld [vmem:[#allocation2 + $0x28] sm:$0xf]
    %v113 = vld [vmem:[#allocation2 + $0x2c] sm:$0xf]
    %v114 = vld [vmem:[#allocation2 + $0x30] sm:$0xf]
    %v115 = vld [vmem:[#allocation2 + $0x34] sm:$0xf]
    %v116 = vld [vmem:[#allocation2 + $0x38] sm:$0xf]
    %v117 = vld [vmem:[#allocation2 + $0x3c] sm:$0xf]
    %v118 = vld [vmem:[#allocation6] sm:$0xf]
    %v119 = vld [vmem:[#allocation6 + $0x4] sm:$0xf]
    %v120 = vld [vmem:[#allocation6 + $0x8] sm:$0xf]
    %v121 = vld [vmem:[#allocation6 + $0xc] sm:$0xf]
    %v122 = vld [vmem:[#allocation6 + $0x10] sm:$0xf]
    %v123 = vld [vmem:[#allocation6 + $0x14] sm:$0xf]
    %v124 = vld [vmem:[#allocation6 + $0x18] sm:$0xf]
    %v125 = vld [vmem:[#allocation6 + $0x1c] sm:$0xf]
    %v126 = vld [vmem:[#allocation6 + $0x20] sm:$0xf]
    %v127 = vld [vmem:[#allocation6 + $0x24] sm:$0xf]
    %v128 = vld [vmem:[#allocation6 + $0x28] sm:$0xf]
    %v129 = vld [vmem:[#allocation6 + $0x2c] sm:$0xf]
    %v130 = vld [vmem:[#allocation6 + $0x30] sm:$0xf]
    %v131 = vld [vmem:[#allocation6 + $0x34] sm:$0xf]
    %v132 = vld [vmem:[#allocation6 + $0x38] sm:$0xf]
    %v133 = vld [vmem:[#allocation6 + $0x3c] sm:$0xf]
    %v134 = vld [vmem:[%s2] sm:$0x1]
    %v136 = vlaneseq
    %v137 = vshrl.u32 %v136, 7
    %v138 = vsub.s32 0, %v137
    %v139 = vrot.slane %v134, %v138
    %v157 = vunpack.c.l.b16 %v102
    %v158 = vunpack.c.l.b16 %v103
    %v159 = vunpack.c.l.b16 %v104
    %v160 = vunpack.c.l.b16 %v105
    %v161 = vunpack.c.l.b16 %v106
    %v162 = vunpack.c.l.b16 %v107
    %v163 = vunpack.c.l.b16 %v108
    %v164 = vunpack.c.l.b16 %v109
    %v165 = vunpack.c.l.b16 %v110
    %v166 = vunpack.c.l.b16 %v111
    %v167 = vunpack.c.l.b16 %v112
    %v168 = vunpack.c.l.b16 %v113
    %v169 = vunpack.c.l.b16 %v114
    %v170 = vunpack.c.l.b16 %v115
    %v171 = vunpack.c.l.b16 %v116
    %v172 = vunpack.c.l.b16 %v117
    %v173 = vpack.c.b16 %v158, %v157
    %v174 = vpack.c.b16 %v160, %v159
    %v175 = vpack.c.b16 %v162, %v161
    %v176 = vpack.c.b16 %v164, %v163
    %v177 = vpack.c.b16 %v166, %v165
    %v178 = vpack.c.b16 %v168, %v167
    %v179 = vpack.c.b16 %v170, %v169
    %v180 = vpack.c.b16 %v172, %v171
    %v205 = vunpack.c.l.b16 %v118
    %v206 = vunpack.c.l.b16 %v119
    %v207 = vunpack.c.l.b16 %v120
    %v208 = vunpack.c.l.b16 %v121
    %v209 = vunpack.c.l.b16 %v122
    %v210 = vunpack.c.l.b16 %v123
    %v211 = vunpack.c.l.b16 %v124
    %v212 = vunpack.c.l.b16 %v125
    %v213 = vunpack.c.l.b16 %v126
    %v214 = vunpack.c.l.b16 %v127
    %v215 = vunpack.c.l.b16 %v128
    %v216 = vunpack.c.l.b16 %v129
    %v217 = vunpack.c.l.b16 %v130
    %v218 = vunpack.c.l.b16 %v131
    %v219 = vunpack.c.l.b16 %v132
    %v220 = vunpack.c.l.b16 %v133
    %v221 = vpack.c.b16 %v206, %v205
    %v222 = vpack.c.b16 %v208, %v207
    %v223 = vpack.c.b16 %v210, %v209
    %v224 = vpack.c.b16 %v212, %v211
    %v225 = vpack.c.b16 %v214, %v213
    %v226 = vpack.c.b16 %v216, %v215
    %v227 = vpack.c.b16 %v218, %v217
    %v228 = vpack.c.b16 %v220, %v219
    %237 = vmatprep.subr.bf16.mxu0 0
    %238 = vmatpush1.bf16.msra.mxu0 %v228
    %239 = vmatprep.subr.bf16.mxu0 0
    %240 = vmatpush1.bf16.msra.mxu0 %v227
    %241 = vmatprep.subr.bf16.mxu0 0
    %242 = vmatpush1.bf16.msra.mxu0 %v226
    %243 = vmatprep.subr.bf16.mxu0 0
    %244 = vmatpush1.bf16.msra.mxu0 %v225
    %245 = vmatprep.subr.bf16.mxu0 0
    %246 = vmatpush1.bf16.msra.mxu0 %v224
    %247 = vmatprep.subr.bf16.mxu0 0
    %248 = vmatpush1.bf16.msra.mxu0 %v223
    %249 = vmatprep.subr.bf16.mxu0 0
    %250 = vmatpush1.bf16.msra.mxu0 %v222
    %251 = vmatprep.subr.bf16.mxu0 0
    %252 = vmatpush1.bf16.msra.mxu0 %v221
    %253 = vmatprep.subr.bf16.mxu0 0
    %254 = vmatpush2.bf16.msra.mxu0 0
    %255 = vmatprep.subr.bf16.mxu0 0
    %256 = vmatpush2.bf16.msra.mxu0 0
    %257 = vmatprep.subr.bf16.mxu0 0
    %258 = vmatpush2.bf16.msra.mxu0 0
    %259 = vmatprep.subr.bf16.mxu0 0
    %260 = vmatpush2.bf16.msra.mxu0 0
    %261 = vmatprep.subr.bf16.mxu0 0
    %262 = vmatpush2.bf16.msra.mxu0 0
    %263 = vmatprep.subr.bf16.mxu0 0
    %264 = vmatpush2.bf16.msra.mxu0 0
    %265 = vmatprep.subr.bf16.mxu0 0
    %266 = vmatpush2.bf16.msra.mxu0 0
    %267 = vmatprep.subr.bf16.mxu0 0
    %268 = vmatpush2.bf16.msra.mxu0 0
    %269 = vmatprep.mubr.bf16.mxu0 0
    %270 = vmatmul.mubr.bf16.gmra.mxu0 %v173
    %v271 = vpop.f32.mrf.mxu0
    %v272 = vadd.f32 %v139, %v271
    %v273 = vpop.f32.mrf.mxu0
    %v274 = vpop.f32.mrf.mxu0
    %v275 = vadd.f32 %v139, %v274
    %v276 = vpop.f32.mrf.mxu0
    %277 = vmatprep.mubr.bf16.mxu0 0
    %278 = vmatmul.mubr.bf16.gmra.mxu0 %v174
    %v279 = vpop.f32.mrf.mxu0
    %v280 = vadd.f32 %v139, %v279
    %v281 = vpop.f32.mrf.mxu0
    %v282 = vpop.f32.mrf.mxu0
    %v283 = vadd.f32 %v139, %v282
    %v284 = vpop.f32.mrf.mxu0
    %285 = vmatprep.mubr.bf16.mxu0 0
    %286 = vmatmul.mubr.bf16.gmra.mxu0 %v175
    %v287 = vpop.f32.mrf.mxu0
    %v288 = vadd.f32 %v139, %v287
    %v289 = vpop.f32.mrf.mxu0
    %v290 = vpop.f32.mrf.mxu0
    %v291 = vadd.f32 %v139, %v290
    %v292 = vpop.f32.mrf.mxu0
    %293 = vmatprep.mubr.bf16.mxu0 0
    %294 = vmatmul.mubr.bf16.gmra.mxu0 %v176
    %v295 = vpop.f32.mrf.mxu0
    %v296 = vadd.f32 %v139, %v295
    %v297 = vpop.f32.mrf.mxu0
    %v298 = vpop.f32.mrf.mxu0
    %v299 = vadd.f32 %v139, %v298
    %v300 = vpop.f32.mrf.mxu0
    %301 = vmatprep.mubr.bf16.mxu0 0
    %302 = vmatmul.mubr.bf16.gmra.mxu0 %v177
    %v303 = vpop.f32.mrf.mxu0
    %v304 = vadd.f32 %v139, %v303
    %v305 = vpop.f32.mrf.mxu0
    %v306 = vpop.f32.mrf.mxu0
    %v307 = vadd.f32 %v139, %v306
    %v308 = vpop.f32.mrf.mxu0
    %309 = vmatprep.mubr.bf16.mxu0 0
    %310 = vmatmul.mubr.bf16.gmra.mxu0 %v178
    %v311 = vpop.f32.mrf.mxu0
    %v312 = vadd.f32 %v139, %v311
    %v313 = vpop.f32.mrf.mxu0
    %v314 = vpop.f32.mrf.mxu0
    %v315 = vadd.f32 %v139, %v314
    %v316 = vpop.f32.mrf.mxu0
    %317 = vmatprep.mubr.bf16.mxu0 0
    %318 = vmatmul.mubr.bf16.gmra.mxu0 %v179
    %v319 = vpop.f32.mrf.mxu0
    %v320 = vadd.f32 %v139, %v319
    %v321 = vpop.f32.mrf.mxu0
    %v322 = vpop.f32.mrf.mxu0
    %v323 = vadd.f32 %v139, %v322
    %v324 = vpop.f32.mrf.mxu0
    %325 = vmatprep.mubr.bf16.mxu0 0
    %326 = vmatmul.mubr.bf16.gmra.mxu0 %v180
    %v327 = vpop.f32.mrf.mxu0
    %v328 = vadd.f32 %v139, %v327
    %v329 = vpop.f32.mrf.mxu0
    %v330 = vpop.f32.mrf.mxu0
    %v331 = vadd.f32 %v139, %v330
    %v332 = vpop.f32.mrf.mxu0
    %333 = vdwg.mxu0
    %v334 = vpack.c.bf16 %v275, %v272
    %v335 = vpack.c.bf16 %v283, %v280
    %v336 = vpack.c.bf16 %v291, %v288
    %v337 = vpack.c.bf16 %v299, %v296
    %v338 = vpack.c.bf16 %v307, %v304
    %v339 = vpack.c.bf16 %v315, %v312
    %v340 = vpack.c.bf16 %v323, %v320
    %v341 = vpack.c.bf16 %v331, %v328
    %p343 = scmp.ne.f32.partialorder %s100, %s100
    %s344 = sshrl.u32 %s100, 16
    %s345 = sand.u32 %s344, 1
    %s346 = sadd.s32 32767, %s345
    %s347 = sadd.s32 %s100, %s346
    %s348 = sand.u32 %s347, 4294901760
    %s349 = scalar_select %p343, 2143289344, %s348
    %s351 = sshrl.u32 %s349, 16
    %s352 = sshll.u32 %s351, 16
    %s353 = sor.u32 %s351, %s352
    %v354 = vstv %s353
    %v356 = vmul.bf16 %v334, %v354
    %v357 = vmul.bf16 %v335, %v354
    %v358 = vmul.bf16 %v336, %v354
    %v359 = vmul.bf16 %v337, %v354
    %v360 = vmul.bf16 %v338, %v354
    %v361 = vmul.bf16 %v339, %v354
    %v362 = vmul.bf16 %v340, %v354
    %v363 = vmul.bf16 %v341, %v354
    %v364 = vxor.u32 %v356, 2147516416
    %v365 = vxor.u32 %v357, 2147516416
    %v366 = vxor.u32 %v358, 2147516416
    %v367 = vxor.u32 %v359, 2147516416
    %v368 = vxor.u32 %v360, 2147516416
    %v369 = vxor.u32 %v361, 2147516416
    %v370 = vxor.u32 %v362, 2147516416
    %v371 = vxor.u32 %v363, 2147516416
    %v373 = vmul.bf16 %v364, 1069105081
    %v374 = vpow.bf16.pop %v373
    %v376 = vmul.bf16 %v365, 1069105081
    %v377 = vpow.bf16.pop %v376
    %v379 = vmul.bf16 %v366, 1069105081
    %v380 = vpow.bf16.pop %v379
    %v382 = vmul.bf16 %v367, 1069105081
    %v383 = vpow.bf16.pop %v382
    %v385 = vmul.bf16 %v368, 1069105081
    %v386 = vpow.bf16.pop %v385
    %v388 = vmul.bf16 %v369, 1069105081
    %v389 = vpow.bf16.pop %v388
    %v391 = vmul.bf16 %v370, 1069105081
    %v392 = vpow.bf16.pop %v391
    %v394 = vmul.bf16 %v371, 1069105081
    %v395 = vpow.bf16.pop %v394
    %v396 = vadd.bf16 %v374, 1065369472
    %v397 = vadd.bf16 %v377, 1065369472
    %v398 = vadd.bf16 %v380, 1065369472
    %v399 = vadd.bf16 %v383, 1065369472
    %v400 = vadd.bf16 %v386, 1065369472
    %v401 = vadd.bf16 %v389, 1065369472
    %v402 = vadd.bf16 %v392, 1065369472
    %v403 = vadd.bf16 %v395, 1065369472
    %v404 = vrcp.bf16.pop %v396
    %v405 = vmul.bf16 1065369472, %v404
    %v406 = vrcp.bf16.pop %v397
    %v407 = vmul.bf16 1065369472, %v406
    %v408 = vrcp.bf16.pop %v398
    %v409 = vmul.bf16 1065369472, %v408
    %v410 = vrcp.bf16.pop %v399
    %v411 = vmul.bf16 1065369472, %v410
    %v412 = vrcp.bf16.pop %v400
    %v413 = vmul.bf16 1065369472, %v412
    %v414 = vrcp.bf16.pop %v401
    %v415 = vmul.bf16 1065369472, %v414
    %v416 = vrcp.bf16.pop %v402
    %v417 = vmul.bf16 1065369472, %v416
    %v418 = vrcp.bf16.pop %v403
    %v419 = vmul.bf16 1065369472, %v418
    %v420 = vmul.bf16 %v334, %v405
    %v421 = vmul.bf16 %v335, %v407
    %v422 = vmul.bf16 %v336, %v409
    %v423 = vmul.bf16 %v337, %v411
    %v424 = vmul.bf16 %v338, %v413
    %v425 = vmul.bf16 %v339, %v415
    %v426 = vmul.bf16 %v340, %v417
    %v427 = vmul.bf16 %v341, %v419
    %v428 = vld [vmem:[#allocation8] sm:$0xf]
    %v429 = vld [vmem:[#allocation8 + $0x4] sm:$0xf]
    %v430 = vld [vmem:[#allocation8 + $0x8] sm:$0xf]
    %v431 = vld [vmem:[#allocation8 + $0xc] sm:$0xf]
    %v432 = vld [vmem:[#allocation8 + $0x10] sm:$0xf]
    %v433 = vld [vmem:[#allocation8 + $0x14] sm:$0xf]
    %v434 = vld [vmem:[#allocation8 + $0x18] sm:$0xf]
    %v435 = vld [vmem:[#allocation8 + $0x1c] sm:$0xf]
    %v436 = vld [vmem:[#allocation8 + $0x20] sm:$0xf]
    %v437 = vld [vmem:[#allocation8 + $0x24] sm:$0xf]
    %v438 = vld [vmem:[#allocation8 + $0x28] sm:$0xf]
    %v439 = vld [vmem:[#allocation8 + $0x2c] sm:$0xf]
    %v440 = vld [vmem:[#allocation8 + $0x30] sm:$0xf]
    %v441 = vld [vmem:[#allocation8 + $0x34] sm:$0xf]
    %v442 = vld [vmem:[#allocation8 + $0x38] sm:$0xf]
    %v443 = vld [vmem:[#allocation8 + $0x3c] sm:$0xf]
    %v444 = vld [vmem:[%s4] sm:$0x1]
    %v446 = vlaneseq
    %v447 = vshrl.u32 %v446, 7
    %v448 = vsub.s32 0, %v447
    %v449 = vrot.slane %v444, %v448
    %v467 = vunpack.c.l.b16 %v428
    %v468 = vunpack.c.l.b16 %v429
    %v469 = vunpack.c.l.b16 %v430
    %v470 = vunpack.c.l.b16 %v431
    %v471 = vunpack.c.l.b16 %v432
    %v472 = vunpack.c.l.b16 %v433
    %v473 = vunpack.c.l.b16 %v434
    %v474 = vunpack.c.l.b16 %v435
    %v475 = vunpack.c.l.b16 %v436
    %v476 = vunpack.c.l.b16 %v437
    %v477 = vunpack.c.l.b16 %v438
    %v478 = vunpack.c.l.b16 %v439
    %v479 = vunpack.c.l.b16 %v440
    %v480 = vunpack.c.l.b16 %v441
    %v481 = vunpack.c.l.b16 %v442
    %v482 = vunpack.c.l.b16 %v443
    %v483 = vpack.c.b16 %v468, %v467
    %v484 = vpack.c.b16 %v470, %v469
    %v485 = vpack.c.b16 %v472, %v471
    %v486 = vpack.c.b16 %v474, %v473
    %v487 = vpack.c.b16 %v476, %v475
    %v488 = vpack.c.b16 %v478, %v477
    %v489 = vpack.c.b16 %v480, %v479
    %v490 = vpack.c.b16 %v482, %v481
    %499 = vmatprep.subr.bf16.mxu0 0
    %500 = vmatpush1.bf16.msra.mxu0 %v490
    %501 = vmatprep.subr.bf16.mxu0 0
    %502 = vmatpush1.bf16.msra.mxu0 %v489
    %503 = vmatprep.subr.bf16.mxu0 0
    %504 = vmatpush1.bf16.msra.mxu0 %v488
    %505 = vmatprep.subr.bf16.mxu0 0
    %506 = vmatpush1.bf16.msra.mxu0 %v487
    %507 = vmatprep.subr.bf16.mxu0 0
    %508 = vmatpush1.bf16.msra.mxu0 %v486
    %509 = vmatprep.subr.bf16.mxu0 0
    %510 = vmatpush1.bf16.msra.mxu0 %v485
    %511 = vmatprep.subr.bf16.mxu0 0
    %512 = vmatpush1.bf16.msra.mxu0 %v484
    %513 = vmatprep.subr.bf16.mxu0 0
    %514 = vmatpush1.bf16.msra.mxu0 %v483
    %515 = vmatprep.subr.bf16.mxu0 0
    %516 = vmatpush2.bf16.msra.mxu0 0
    %517 = vmatprep.subr.bf16.mxu0 0
    %518 = vmatpush2.bf16.msra.mxu0 0
    %519 = vmatprep.subr.bf16.mxu0 0
    %520 = vmatpush2.bf16.msra.mxu0 0
    %521 = vmatprep.subr.bf16.mxu0 0
    %522 = vmatpush2.bf16.msra.mxu0 0
    %523 = vmatprep.subr.bf16.mxu0 0
    %524 = vmatpush2.bf16.msra.mxu0 0
    %525 = vmatprep.subr.bf16.mxu0 0
    %526 = vmatpush2.bf16.msra.mxu0 0
    %527 = vmatprep.subr.bf16.mxu0 0
    %528 = vmatpush2.bf16.msra.mxu0 0
    %529 = vmatprep.subr.bf16.mxu0 0
    %530 = vmatpush2.bf16.msra.mxu0 0
    %531 = vmatprep.mubr.bf16.mxu0 0
    %532 = vmatmul.mubr.bf16.gmra.mxu0 %v420
    %v533 = vpop.f32.mrf.mxu0
    %v534 = vadd.f32 %v449, %v533
    %v535 = vpop.f32.mrf.mxu0
    %v536 = vpop.f32.mrf.mxu0
    %v537 = vadd.f32 %v449, %v536
    %v538 = vpop.f32.mrf.mxu0
    %539 = vmatprep.mubr.bf16.mxu0 0
    %540 = vmatmul.mubr.bf16.gmra.mxu0 %v421
    %v541 = vpop.f32.mrf.mxu0
    %v542 = vadd.f32 %v449, %v541
    %v543 = vpop.f32.mrf.mxu0
    %v544 = vpop.f32.mrf.mxu0
    %v545 = vadd.f32 %v449, %v544
    %v546 = vpop.f32.mrf.mxu0
    %547 = vmatprep.mubr.bf16.mxu0 0
    %548 = vmatmul.mubr.bf16.gmra.mxu0 %v422
    %v549 = vpop.f32.mrf.mxu0
    %v550 = vadd.f32 %v449, %v549
    %v551 = vpop.f32.mrf.mxu0
    %v552 = vpop.f32.mrf.mxu0
    %v553 = vadd.f32 %v449, %v552
    %v554 = vpop.f32.mrf.mxu0
    %555 = vmatprep.mubr.bf16.mxu0 0
    %556 = vmatmul.mubr.bf16.gmra.mxu0 %v423
    %v557 = vpop.f32.mrf.mxu0
    %v558 = vadd.f32 %v449, %v557
    %v559 = vpop.f32.mrf.mxu0
    %v560 = vpop.f32.mrf.mxu0
    %v561 = vadd.f32 %v449, %v560
    %v562 = vpop.f32.mrf.mxu0
    %563 = vmatprep.mubr.bf16.mxu0 0
    %564 = vmatmul.mubr.bf16.gmra.mxu0 %v424
    %v565 = vpop.f32.mrf.mxu0
    %v566 = vadd.f32 %v449, %v565
    %v567 = vpop.f32.mrf.mxu0
    %v568 = vpop.f32.mrf.mxu0
    %v569 = vadd.f32 %v449, %v568
    %v570 = vpop.f32.mrf.mxu0
    %571 = vmatprep.mubr.bf16.mxu0 0
    %572 = vmatmul.mubr.bf16.gmra.mxu0 %v425
    %v573 = vpop.f32.mrf.mxu0
    %v574 = vadd.f32 %v449, %v573
    %v575 = vpop.f32.mrf.mxu0
    %v576 = vpop.f32.mrf.mxu0
    %v577 = vadd.f32 %v449, %v576
    %v578 = vpop.f32.mrf.mxu0
    %579 = vmatprep.mubr.bf16.mxu0 0
    %580 = vmatmul.mubr.bf16.gmra.mxu0 %v426
    %v581 = vpop.f32.mrf.mxu0
    %v582 = vadd.f32 %v449, %v581
    %v583 = vpop.f32.mrf.mxu0
    %v584 = vpop.f32.mrf.mxu0
    %v585 = vadd.f32 %v449, %v584
    %v586 = vpop.f32.mrf.mxu0
    %587 = vmatprep.mubr.bf16.mxu0 0
    %588 = vmatmul.mubr.bf16.gmra.mxu0 %v427
    %v589 = vpop.f32.mrf.mxu0
    %v590 = vadd.f32 %v449, %v589
    %v591 = vpop.f32.mrf.mxu0
    %v592 = vpop.f32.mrf.mxu0
    %v593 = vadd.f32 %v449, %v592
    %v594 = vpop.f32.mrf.mxu0
    %595 = vdwg.mxu0
    %v596 = vpack.c.bf16 %v537, %v534
    %v597 = vpack.c.bf16 %v545, %v542
    %v598 = vpack.c.bf16 %v553, %v550
    %v599 = vpack.c.bf16 %v561, %v558
    %v600 = vpack.c.bf16 %v569, %v566
    %v601 = vpack.c.bf16 %v577, %v574
    %v602 = vpack.c.bf16 %v585, %v582
    %v603 = vpack.c.bf16 %v593, %v590
    %p605 = scmp.ne.f32.partialorder %s101, %s101
    %s606 = sshrl.u32 %s101, 16
    %s607 = sand.u32 %s606, 1
    %s608 = sadd.s32 32767, %s607
    %s609 = sadd.s32 %s101, %s608
    %s610 = sand.u32 %s609, 4294901760
    %s611 = scalar_select %p605, 2143289344, %s610
    %s613 = sshrl.u32 %s611, 16
    %s614 = sshll.u32 %s613, 16
    %s615 = sor.u32 %s613, %s614
    %v616 = vstv %s615
    %v618 = vmul.bf16 %v596, %v616
    %v619 = vmul.bf16 %v597, %v616
    %v620 = vmul.bf16 %v598, %v616
    %v621 = vmul.bf16 %v599, %v616
    %v622 = vmul.bf16 %v600, %v616
    %v623 = vmul.bf16 %v601, %v616
    %v624 = vmul.bf16 %v602, %v616
    %v625 = vmul.bf16 %v603, %v616
    %v626 = vxor.u32 %v618, 2147516416
    %v627 = vxor.u32 %v619, 2147516416
    %v628 = vxor.u32 %v620, 2147516416
    %v629 = vxor.u32 %v621, 2147516416
    %v630 = vxor.u32 %v622, 2147516416
    %v631 = vxor.u32 %v623, 2147516416
    %v632 = vxor.u32 %v624, 2147516416
    %v633 = vxor.u32 %v625, 2147516416
    %v635 = vmul.bf16 %v626, 1069105081
    %v636 = vpow.bf16.pop %v635
    %v638 = vmul.bf16 %v627, 1069105081
    %v639 = vpow.bf16.pop %v638
    %v641 = vmul.bf16 %v628, 1069105081
    %v642 = vpow.bf16.pop %v641
    %v644 = vmul.bf16 %v629, 1069105081
    %v645 = vpow.bf16.pop %v644
    %v647 = vmul.bf16 %v630, 1069105081
    %v648 = vpow.bf16.pop %v647
    %v650 = vmul.bf16 %v631, 1069105081
    %v651 = vpow.bf16.pop %v650
    %v653 = vmul.bf16 %v632, 1069105081
    %v654 = vpow.bf16.pop %v653
    %v656 = vmul.bf16 %v633, 1069105081
    %v657 = vpow.bf16.pop %v656
    %v658 = vadd.bf16 %v636, 1065369472
    %v659 = vadd.bf16 %v639, 1065369472
    %v660 = vadd.bf16 %v642, 1065369472
    %v661 = vadd.bf16 %v645, 1065369472
    %v662 = vadd.bf16 %v648, 1065369472
    %v663 = vadd.bf16 %v651, 1065369472
    %v664 = vadd.bf16 %v654, 1065369472
    %v665 = vadd.bf16 %v657, 1065369472
    %v666 = vrcp.bf16.pop %v658
    %v667 = vmul.bf16 1065369472, %v666
    %v668 = vrcp.bf16.pop %v659
    %v669 = vmul.bf16 1065369472, %v668
    %v670 = vrcp.bf16.pop %v660
    %v671 = vmul.bf16 1065369472, %v670
    %v672 = vrcp.bf16.pop %v661
    %v673 = vmul.bf16 1065369472, %v672
    %v674 = vrcp.bf16.pop %v662
    %v675 = vmul.bf16 1065369472, %v674
    %v676 = vrcp.bf16.pop %v663
    %v677 = vmul.bf16 1065369472, %v676
    %v678 = vrcp.bf16.pop %v664
    %v679 = vmul.bf16 1065369472, %v678
    %v680 = vrcp.bf16.pop %v665
    %v681 = vmul.bf16 1065369472, %v680
    %v682 = vmul.bf16 %v596, %v667
    %v683 = vmul.bf16 %v597, %v669
    %v684 = vmul.bf16 %v598, %v671
    %v685 = vmul.bf16 %v599, %v673
    %v686 = vmul.bf16 %v600, %v675
    %v687 = vmul.bf16 %v601, %v677
    %v688 = vmul.bf16 %v602, %v679
    %v689 = vmul.bf16 %v603, %v681
    %v690 = vld [vmem:[#allocation9] sm:$0xf]
    %v691 = vld [vmem:[#allocation9 + $0x4] sm:$0xf]
    %v692 = vld [vmem:[#allocation9 + $0x8] sm:$0xf]
    %v693 = vld [vmem:[#allocation9 + $0xc] sm:$0xf]
    %v694 = vld [vmem:[#allocation9 + $0x10] sm:$0xf]
    %v695 = vld [vmem:[#allocation9 + $0x14] sm:$0xf]
    %v696 = vld [vmem:[#allocation9 + $0x18] sm:$0xf]
    %v697 = vld [vmem:[#allocation9 + $0x1c] sm:$0xf]
    %v698 = vld [vmem:[#allocation9 + $0x20] sm:$0xf]
    %v699 = vld [vmem:[#allocation9 + $0x24] sm:$0xf]
    %v700 = vld [vmem:[#allocation9 + $0x28] sm:$0xf]
    %v701 = vld [vmem:[#allocation9 + $0x2c] sm:$0xf]
    %v702 = vld [vmem:[#allocation9 + $0x30] sm:$0xf]
    %v703 = vld [vmem:[#allocation9 + $0x34] sm:$0xf]
    %v704 = vld [vmem:[#allocation9 + $0x38] sm:$0xf]
    %v705 = vld [vmem:[#allocation9 + $0x3c] sm:$0xf]
    %v706 = vld [vmem:[%s6] sm:$0x1]
    %v708 = vlaneseq
    %v709 = vshrl.u32 %v708, 7
    %v710 = vsub.s32 0, %v709
    %v711 = vrot.slane %v706, %v710
    %v729 = vunpack.c.l.b16 %v690
    %v730 = vunpack.c.l.b16 %v691
    %v731 = vunpack.c.l.b16 %v692
    %v732 = vunpack.c.l.b16 %v693
    %v733 = vunpack.c.l.b16 %v694
    %v734 = vunpack.c.l.b16 %v695
    %v735 = vunpack.c.l.b16 %v696
    %v736 = vunpack.c.l.b16 %v697
    %v737 = vunpack.c.l.b16 %v698
    %v738 = vunpack.c.l.b16 %v699
    %v739 = vunpack.c.l.b16 %v700
    %v740 = vunpack.c.l.b16 %v701
    %v741 = vunpack.c.l.b16 %v702
    %v742 = vunpack.c.l.b16 %v703
    %v743 = vunpack.c.l.b16 %v704
    %v744 = vunpack.c.l.b16 %v705
    %v745 = vpack.c.b16 %v730, %v729
    %v746 = vpack.c.b16 %v732, %v731
    %v747 = vpack.c.b16 %v734, %v733
    %v748 = vpack.c.b16 %v736, %v735
    %v749 = vpack.c.b16 %v738, %v737
    %v750 = vpack.c.b16 %v740, %v739
    %v751 = vpack.c.b16 %v742, %v741
    %v752 = vpack.c.b16 %v744, %v743
    %761 = vmatprep.subr.bf16.mxu0 0
    %762 = vmatpush1.bf16.msra.mxu0 %v752
    %763 = vmatprep.subr.bf16.mxu0 0
    %764 = vmatpush1.bf16.msra.mxu0 %v751
    %765 = vmatprep.subr.bf16.mxu0 0
    %766 = vmatpush1.bf16.msra.mxu0 %v750
    %767 = vmatprep.subr.bf16.mxu0 0
    %768 = vmatpush1.bf16.msra.mxu0 %v749
    %769 = vmatprep.subr.bf16.mxu0 0
    %770 = vmatpush1.bf16.msra.mxu0 %v748
    %771 = vmatprep.subr.bf16.mxu0 0
    %772 = vmatpush1.bf16.msra.mxu0 %v747
    %773 = vmatprep.subr.bf16.mxu0 0
    %774 = vmatpush1.bf16.msra.mxu0 %v746
    %775 = vmatprep.subr.bf16.mxu0 0
    %776 = vmatpush1.bf16.msra.mxu0 %v745
    %777 = vmatprep.subr.bf16.mxu0 0
    %778 = vmatpush2.bf16.msra.mxu0 0
    %779 = vmatprep.subr.bf16.mxu0 0
    %780 = vmatpush2.bf16.msra.mxu0 0
    %781 = vmatprep.subr.bf16.mxu0 0
    %782 = vmatpush2.bf16.msra.mxu0 0
    %783 = vmatprep.subr.bf16.mxu0 0
    %784 = vmatpush2.bf16.msra.mxu0 0
    %785 = vmatprep.subr.bf16.mxu0 0
    %786 = vmatpush2.bf16.msra.mxu0 0
    %787 = vmatprep.subr.bf16.mxu0 0
    %788 = vmatpush2.bf16.msra.mxu0 0
    %789 = vmatprep.subr.bf16.mxu0 0
    %790 = vmatpush2.bf16.msra.mxu0 0
    %791 = vmatprep.subr.bf16.mxu0 0
    %792 = vmatpush2.bf16.msra.mxu0 0
    %793 = vmatprep.mubr.bf16.mxu0 0
    %794 = vmatmul.mubr.bf16.gmra.mxu0 %v682
    %v795 = vpop.f32.mrf.mxu0
    %v796 = vadd.f32 %v711, %v795
    %v797 = vpop.f32.mrf.mxu0
    %v798 = vpop.f32.mrf.mxu0
    %v799 = vadd.f32 %v711, %v798
    %v800 = vpop.f32.mrf.mxu0
    %801 = vmatprep.mubr.bf16.mxu0 0
    %802 = vmatmul.mubr.bf16.gmra.mxu0 %v683
    %v803 = vpop.f32.mrf.mxu0
    %v804 = vadd.f32 %v711, %v803
    %v805 = vpop.f32.mrf.mxu0
    %v806 = vpop.f32.mrf.mxu0
    %v807 = vadd.f32 %v711, %v806
    %v808 = vpop.f32.mrf.mxu0
    %809 = vmatprep.mubr.bf16.mxu0 0
    %810 = vmatmul.mubr.bf16.gmra.mxu0 %v684
    %v811 = vpop.f32.mrf.mxu0
    %v812 = vadd.f32 %v711, %v811
    %v813 = vpop.f32.mrf.mxu0
    %v814 = vpop.f32.mrf.mxu0
    %v815 = vadd.f32 %v711, %v814
    %v816 = vpop.f32.mrf.mxu0
    %817 = vmatprep.mubr.bf16.mxu0 0
    %818 = vmatmul.mubr.bf16.gmra.mxu0 %v685
    %v819 = vpop.f32.mrf.mxu0
    %v820 = vadd.f32 %v711, %v819
    %v821 = vpop.f32.mrf.mxu0
    %v822 = vpop.f32.mrf.mxu0
    %v823 = vadd.f32 %v711, %v822
    %v824 = vpop.f32.mrf.mxu0
    %825 = vmatprep.mubr.bf16.mxu0 0
    %826 = vmatmul.mubr.bf16.gmra.mxu0 %v686
    %v827 = vpop.f32.mrf.mxu0
    %v828 = vadd.f32 %v711, %v827
    %v829 = vpop.f32.mrf.mxu0
    %v830 = vpop.f32.mrf.mxu0
    %v831 = vadd.f32 %v711, %v830
    %v832 = vpop.f32.mrf.mxu0
    %833 = vmatprep.mubr.bf16.mxu0 0
    %834 = vmatmul.mubr.bf16.gmra.mxu0 %v687
    %v835 = vpop.f32.mrf.mxu0
    %v836 = vadd.f32 %v711, %v835
    %v837 = vpop.f32.mrf.mxu0
    %v838 = vpop.f32.mrf.mxu0
    %v839 = vadd.f32 %v711, %v838
    %v840 = vpop.f32.mrf.mxu0
    %841 = vmatprep.mubr.bf16.mxu0 0
    %842 = vmatmul.mubr.bf16.gmra.mxu0 %v688
    %v843 = vpop.f32.mrf.mxu0
    %v844 = vadd.f32 %v711, %v843
    %v845 = vpop.f32.mrf.mxu0
    %v846 = vpop.f32.mrf.mxu0
    %v847 = vadd.f32 %v711, %v846
    %v848 = vpop.f32.mrf.mxu0
    %849 = vmatprep.mubr.bf16.mxu0 0
    %850 = vmatmul.mubr.bf16.gmra.mxu0 %v689
    %v851 = vpop.f32.mrf.mxu0
    %v852 = vadd.f32 %v711, %v851
    %v853 = vpop.f32.mrf.mxu0
    %v854 = vpop.f32.mrf.mxu0
    %v855 = vadd.f32 %v711, %v854
    %v856 = vpop.f32.mrf.mxu0
    %857 = vdwg.mxu0
    %858 = vst [vmem:[#allocation12] sm:$0xff] %v796
    %859 = vst [vmem:[#allocation12 + $0x8] sm:$0xff] %v799
    %860 = vst [vmem:[#allocation12 + $0x10] sm:$0xff] %v804
    %861 = vst [vmem:[#allocation12 + $0x18] sm:$0xff] %v807
    %862 = vst [vmem:[#allocation12 + $0x20] sm:$0xff] %v812
    %863 = vst [vmem:[#allocation12 + $0x28] sm:$0xff] %v815
    %864 = vst [vmem:[#allocation12 + $0x30] sm:$0xff] %v820
    %865 = vst [vmem:[#allocation12 + $0x38] sm:$0xff] %v823
    %866 = vst [vmem:[#allocation12 + $0x40] sm:$0xff] %v828
    %867 = vst [vmem:[#allocation12 + $0x48] sm:$0xff] %v831
    %868 = vst [vmem:[#allocation12 + $0x50] sm:$0xff] %v836
    %869 = vst [vmem:[#allocation12 + $0x58] sm:$0xff] %v839
    %870 = vst [vmem:[#allocation12 + $0x60] sm:$0xff] %v844
    %871 = vst [vmem:[#allocation12 + $0x68] sm:$0xff] %v847
    %872 = vst [vmem:[#allocation12 + $0x70] sm:$0xff] %v852
    %873 = vst [vmem:[#allocation12 + $0x78] sm:$0xff] %v855
    // Predicated region
    $region54: #{tpu_custom_call.1} parent=1 // pred_check
      _
    $region55: #{tpu_custom_call.1} parent=1 // pred_check_branch
      %875 = sbr.rel (0) target = $region57
    $region56: #{tpu_custom_call.1} parent=1 // pred_region
      %s877 = ssub.s32 2048, 2048
      %878 = vsyncadd [#allocation4], %s877
      %s879 = sshll.u32 [#allocation12], 4
      %s880 = int_to_ptr.vmem [resolvable:$true] %s879
      %885 = dma.vmem_to_hbm [thread:$0]  %s880, 2048, %s8, [#allocation4], 128, 128, 8
    $region57: #{tpu_custom_call.1} parent=1 // pred_fallthru
      _
    // Predicated region
    $region58: #{tpu_custom_call.1} parent=1 // pred_check
      _
    $region59: #{tpu_custom_call.1} parent=1 // pred_check_branch
      %887 = sbr.rel (0) target = $region61
    $region60: #{tpu_custom_call.1} parent=1 // pred_region
      %888 = dma.done [#allocation4], 2048
    $region61: #{tpu_custom_call.1} parent=1 // pred_fallthru
      _
    %889 = vsyncpa [#allocation3], 1
    %890 = vsyncpa [#allocation7], 1
    %891 = vsyncpa [#allocation10], 1
    %892 = vsyncpa [#allocation4], 1
    %893 = vsyncpa [#allocation5], 1

</llo_original>
